<compile_context>
chip_gen: v7x
topology: tpu7x:2x2x1
jax: 0.10.0
libtpu: 0.0.40
codegen_flags: <defaults>
</compile_context>

<pallas_src>
import jax
import jax.numpy as jnp
import numpy as np
from jax.experimental import pallas as pl
from jax.experimental.pallas import tpu as pltpu


# ---------------------------------------------------------------------------
# Pallas kernels
# ---------------------------------------------------------------------------
def _phase_accumulate(xbuf, w_ref, a, b, th, wcols):
    """Sum of the 4 taps contributing to output phase (rows 2m+a, cols 2n+b).

    For ConvTranspose2d(stride=2, k=4, p=1):  oy = 2*iy - 1 + ky, so with the
    input pre-padded by 1 the tap at padded row (m + a + dy), padded col
    (n + b + dx) uses kernel position ky = 3 - a - 2*dy, kx = 3 - b - 2*dx.

    xbuf : VMEM scratch ref (TH+2, W+2, Cin) f32 (main rows + 2 halo rows)
    w_ref: (4, 4, Cin, Cout) bf16 weight laid out (ky, kx, Cin, Cout)
    returns (TH, W, Cout) float32
    """
    acc = None
    for dy in range(2):
        for dx in range(2):
            xwin = xbuf[a + dy:a + dy + th,
                        b + dx:b + dx + wcols, :].astype(jnp.bfloat16)
            wk = w_ref[3 - a - 2 * dy, 3 - b - 2 * dx]       # (Cin, Cout) bf16
            d = jax.lax.dot_general(
                xwin, wk,
                dimension_numbers=(((2,), (0,)), ((), ())),
                preferred_element_type=jnp.float32)
            acc = d if acc is None else acc + d
    return acc


def _deconv_bn_relu_kernel(xm_ref, xh_ref, w_ref, scale_ref, shift_ref,
                           o_ref, xbuf):
    """One deconv(s=2,k=4,p=1) + BN(eval) + ReLU layer on a (batch, row-tile).

    xm_ref:      (1, TH, W+2, Cin)     main rows of the 1-padded input
    xh_ref:      (1, 2,  W+2, Cin)     +2-row halo (next rows of same array)
    w_ref:       (4, 4, Cin, Cout)     bf16 ConvTranspose2d weight
    scale/shift: (1, Cout)             folded BatchNorm scale / shift
    o_ref:       (1, TH, 2, W, 2*Cout) phase-major output block
    xbuf:        VMEM (TH+2, W+2, Cin) f32 scratch
    """
    th = xm_ref.shape[1]
    wcols = o_ref.shape[3]
    cout = scale_ref.shape[1]
    xbuf[0:th] = xm_ref[0]
    xbuf[th:th + 2] = xh_ref[0]
    for a in range(2):            # output row parity
        for b in range(2):        # output col parity
            acc = _phase_accumulate(xbuf, w_ref, a, b, th, wcols)
            y = jnp.maximum(acc * scale_ref[0] + shift_ref[0], 0.0)
            o_ref[0, :, a, :, b * cout:(b + 1) * cout] = y.astype(o_ref.dtype)


def _deconv_bn_relu_final_kernel(xm_ref, xh_ref, w_ref, scale_ref, shift_ref,
                                 wf_ref, bias_ref, o_ref, xbuf):
    """Last deconv layer with the final 1x1 conv + bias fused in.

    wf_ref:   (Cout, K) bf16 1x1 conv weight
    bias_ref: (1, K)    f32 bias
    o_ref:    (1, TH, 2, W, 2*K) phase-major heatmap block
    """
    th = xm_ref.shape[1]
    wcols = o_ref.shape[3]
    kout = bias_ref.shape[1]
    xbuf[0:th] = xm_ref[0]
    xbuf[th:th + 2] = xh_ref[0]
    for a in range(2):
        for b in range(2):
            acc = _phase_accumulate(xbuf, w_ref, a, b, th, wcols)
            y = jnp.maximum(acc * scale_ref[0] + shift_ref[0], 0.0)
            heat = jax.lax.dot_general(
                y.astype(jnp.bfloat16), wf_ref[...],
                dimension_numbers=(((2,), (0,)), ((), ())),
                preferred_element_type=jnp.float32) + bias_ref[0]
            o_ref[0, :, a, :, b * kout:(b + 1) * kout] = heat.astype(o_ref.dtype)


# ---------------------------------------------------------------------------
# Wrappers
# ---------------------------------------------------------------------------
def _deconv_block(y_nhwc, w_pt, scale, shift, kernel, final=None, tile_rows=8):
    """deconv+BN+ReLU (optionally fused with the final 1x1 conv), NHWC in/out."""
    if kernel != 4:
        # TODO(synk): only the k=4/p=1 deconv is phase-decomposed here; the
        # k=2 / k=3 variants of _get_deconv_cfg are not implemented.
        raise NotImplementedError("only kernel=4 deconv is supported")
    n, h, w, cin = y_nhwc.shape
    cout = w_pt.shape[1]
    assert h % 2 == 0, "even input height required by the halo BlockSpec"
    th = tile_rows if (h % tile_rows == 0 and tile_rows % 2 == 0) else h

    yp = jnp.pad(y_nhwc, ((0, 0), (1, 1), (1, 1), (0, 0)))   # spatial pad by 1
    wp = w + 2
    w_ph = jnp.transpose(w_pt, (2, 3, 0, 1)).astype(jnp.bfloat16)  # (4,4,Cin,Cout)
    scale2 = scale.reshape(1, cout).astype(jnp.float32)
    shift2 = shift.reshape(1, cout).astype(jnp.float32)

    in_specs = [
        pl.BlockSpec((1, th, wp, cin), lambda i, r: (i, r, 0, 0)),
        pl.BlockSpec((1, 2, wp, cin),
                     lambda i, r: (i, (r + 1) * (th // 2), 0, 0)),
        pl.BlockSpec((4, 4, cin, cout), lambda i, r: (0, 0, 0, 0)),
        pl.BlockSpec((1, cout), lambda i, r: (0, 0)),
        pl.BlockSpec((1, cout), lambda i, r: (0, 0)),
    ]
    args = [yp, yp, w_ph, scale2, shift2]

    if final is None:
        kern = _deconv_bn_relu_kernel
        out_c = cout
    else:
        w_f, b_f = final
        kout = w_f.shape[0]
        wf = jnp.transpose(w_f[:, :, 0, 0], (1, 0)).astype(jnp.bfloat16)  # (Cout,K)
        bf = b_f.reshape(1, kout).astype(jnp.float32)
        in_specs += [pl.BlockSpec((cout, kout), lambda i, r: (0, 0)),
                     pl.BlockSpec((1, kout), lambda i, r: (0, 0))]
        args += [wf, bf]
        kern = _deconv_bn_relu_final_kernel
        out_c = kout

    out5 = pl.pallas_call(
        kern,
        out_shape=jax.ShapeDtypeStruct((n, h, 2, w, 2 * out_c), jnp.float32),
        grid=(n, h // th),
        in_specs=in_specs,
        out_specs=pl.BlockSpec((1, th, 2, w, 2 * out_c),
                               lambda i, r: (i, r, 0, 0, 0)),
        scratch_shapes=[pltpu.VMEM((th + 2, wp, cin), jnp.float32)],
        compiler_params=pltpu.CompilerParams(
            dimension_semantics=("parallel", "parallel"),
            vmem_limit_bytes=64 * 1024 * 1024),
    )(*args)
    # Free (bitcast) reshape: phase-major (N,H,2,W,2C) == NHWC (N,2H,2W,C).
    return out5.reshape(n, 2 * h, 2 * w, out_c)


def top_down_multi_stage_head_forward(x_list, params, tile_rows=8):
    """Forward pass. x_list: list of NCHW tensors, returns list of NCHW heatmaps."""
    outs = []
    for i, x in enumerate(x_list):
        deconvs = params["deconv"][i]
        final = params["final"][i]
        if not deconvs:
            # TODO(synk): num_deconv_layers == 0 (Identity deconv) branch and
            # extra['final_conv_kernel'] in {0, 3} variants are not implemented.
            raise NotImplementedError("num_deconv_layers must be >= 1")
        y = jnp.transpose(x, (0, 2, 3, 1))           # NCHW -> NHWC
        for li, (w_pt, scale, shift, k) in enumerate(deconvs):
            fuse = final if li == len(deconvs) - 1 else None
            y = _deconv_block(y, w_pt, scale, shift, k, final=fuse,
                              tile_rows=tile_rows)
        # TODO(synk): emit NKHW directly from the fused kernel to delete this
        # (small, K-channel) transpose as well.
        outs.append(jnp.transpose(y, (0, 3, 1, 2)))  # NHWC -> NCHW
    return outs


# ---------------------------------------------------------------------------
# Pure-JAX reference (ground-truth ConvTranspose semantics, bf16 operands to
# mirror the kernel's MXU precision, f32 accumulation)
# ---------------------------------------------------------------------------
def _ref_deconv(x_nchw, w_pt):
    w_conv = jnp.transpose(w_pt[:, :, ::-1, ::-1], (1, 0, 2, 3)).astype(jnp.bfloat16)
    return jax.lax.conv_general_dilated(
        x_nchw.astype(jnp.bfloat16), w_conv, window_strides=(1, 1),
        padding=[(2, 2), (2, 2)], lhs_dilation=(2, 2),
        dimension_numbers=("NCHW", "OIHW", "NCHW"),
        preferred_element_type=jnp.float32)


def _ref_forward(x_list, params):
    outs = []
    for i, x in enumerate(x_list):
        y = x
        for (w_pt, scale, shift, kernel) in params["deconv"][i]:
            y = _ref_deconv(y, w_pt)
            y = y * scale[None, :, None, None] + shift[None, :, None, None]
            y = jnp.maximum(y, 0.0)
        w_f, b_f = params["final"][i]
        y = jnp.einsum("nchw,kc->nkhw", y.astype(jnp.bfloat16),
                       w_f[:, :, 0, 0].astype(jnp.bfloat16),
                       preferred_element_type=jnp.float32)
        outs.append(y + b_f[None, :, None, None])
    return outs


# ---------------------------------------------------------------------------
# Deterministic parameter construction (synthetic init, no checkpoint load)
# ---------------------------------------------------------------------------
def make_params(key, in_channels, out_channels, num_stages,
                num_deconv_filters, num_deconv_kernels):
    params = {"deconv": [], "final": []}
    eps = 1e-5
    for _ in range(num_stages):
        cin = in_channels
        stage = []
        for cout, ker in zip(num_deconv_filters, num_deconv_kernels):
            key, k1, k2, k3, k4, k5 = jax.random.split(key, 6)
            w_pt = 0.05 * jax.random.normal(k1, (cin, cout, ker, ker), jnp.float32)
            gamma = 1.0 + 0.1 * jax.random.normal(k2, (cout,), jnp.float32)
            beta = 0.1 * jax.random.normal(k3, (cout,), jnp.float32)
            mean = 0.1 * jax.random.normal(k4, (cout,), jnp.float32)
            var = 0.5 + jnp.abs(jax.random.normal(k5, (cout,), jnp.float32))
            scale = gamma / jnp.sqrt(var + eps)   # BN folded (eval mode)
            shift = beta - mean * scale
            stage.append((w_pt, scale, shift, ker))
            cin = cout
        params["deconv"].append(stage)
        key, k1, k2 = jax.random.split(key, 3)
        w_f = 0.05 * jax.random.normal(k1, (out_channels, cin, 1, 1), jnp.float32)
        b_f = 0.05 * jax.random.normal(k2, (out_channels,), jnp.float32)
        params["final"].append((w_f, b_f))
    return params


if __name__ == "__main__":
    N = 2
    in_channels = 8
    out_channels = 4          # number of keypoints
    num_stages = 2
    num_deconv_layers = 2
    num_deconv_filters = (16, 16)
    num_deconv_kernels = (4, 4)
    H = W = 8                 # spatial -> 32x32 after two stride-2 deconvs

    key = jax.random.PRNGKey(0)
    key, kp = jax.random.split(key)
    params = make_params(kp, in_channels, out_channels, num_stages,
                         num_deconv_filters, num_deconv_kernels)

    x_list = []
    for _ in range(num_stages):
        key, kx = jax.random.split(key)
        x_list.append(jax.random.normal(kx, (N, in_channels, H, W), jnp.float32))

    outs = top_down_multi_stage_head_forward(x_list, params, tile_rows=8)
    outs = [jax.block_until_ready(o) for o in outs]

    refs = _ref_forward(x_list, params)
    for o, r in zip(outs, refs):
        assert o.shape == (N, out_channels, 2 ** num_deconv_layers * H,
                           2 ** num_deconv_layers * W)
        np.testing.assert_allclose(np.asarray(o), np.asarray(r),
                                   rtol=1e-2, atol=5e-4)

    print("KERNEL_OK")
</pallas_src>

<mosaic_0001>
module attributes {stable_mosaic.version = 11 : i64} {
  func.func @_deconv_bn_relu_kernel(%arg0: i32, %arg1: i32, %arg2: memref<1x8x10x8xf32, #tpu.memory_space<vmem>>, %arg3: memref<1x2x10x8xf32, #tpu.memory_space<vmem>>, %arg4: memref<4x4x8x16xbf16, #tpu.memory_space<vmem>>, %arg5: memref<1x16xf32, #tpu.memory_space<vmem>>, %arg6: memref<1x16xf32, #tpu.memory_space<vmem>>, %arg7: memref<1x8x2x8x32xf32, #tpu.memory_space<vmem>>, %arg8: memref<10x10x8xf32, #tpu.memory_space<vmem>>) attributes {dimension_semantics = [#tpu.dimension_semantics<parallel>, #tpu.dimension_semantics<parallel>], iteration_bounds = array<i64: 2, 1>, scalar_prefetch = 0 : i64, scratch_operands = 1 : i64, tpu.core_type = #tpu.core_type<tc>, window_params = [{transform_indices = @transform_0, window_bounds = array<i64: 1, 8, 10, 8>}, {transform_indices = @transform_1, window_bounds = array<i64: 1, 2, 10, 8>}, {pipeline_mode = #tpu.pipeline_mode<synchronous>, transform_indices = @transform_2, window_bounds = array<i64: 4, 4, 8, 16>}, {pipeline_mode = #tpu.pipeline_mode<synchronous>, transform_indices = @transform_3, window_bounds = array<i64: 1, 16>}, {pipeline_mode = #tpu.pipeline_mode<synchronous>, transform_indices = @transform_4, window_bounds = array<i64: 1, 16>}, {transform_indices = @transform_5, window_bounds = array<i64: 1, 8, 2, 8, 32>}]} {
    %c0 = arith.constant 0 : index
    %c0_0 = arith.constant 0 : index
    %c0_1 = arith.constant 0 : index
    %c0_2 = arith.constant 0 : index
    %0 = vector.load %arg2[%c0, %c0_0, %c0_1, %c0_2] : memref<1x8x10x8xf32, #tpu.memory_space<vmem>>, vector<1x8x10x8xf32>
    %1 = vector.shape_cast %0 : vector<1x8x10x8xf32> to vector<8x10x8xf32>
    %c0_3 = arith.constant 0 : index
    %c0_4 = arith.constant 0 : index
    %c0_5 = arith.constant 0 : index
    %2 = vector.load %arg8[%c0_3, %c0_4, %c0_5] : memref<10x10x8xf32, #tpu.memory_space<vmem>>, vector<8x10x8xf32>
    tpu.vector_store %arg8[%c0_3, %c0_4, %c0_5], %1 {strides = array<i32>} : memref<10x10x8xf32, #tpu.memory_space<vmem>>, vector<8x10x8xf32>,
    %c0_6 = arith.constant 0 : index
    %c0_7 = arith.constant 0 : index
    %c0_8 = arith.constant 0 : index
    %c0_9 = arith.constant 0 : index
    %3 = vector.load %arg3[%c0_6, %c0_7, %c0_8, %c0_9] : memref<1x2x10x8xf32, #tpu.memory_space<vmem>>, vector<1x2x10x8xf32>
    %4 = vector.shape_cast %3 : vector<1x2x10x8xf32> to vector<2x10x8xf32>
    %c8 = arith.constant 8 : index
    %c0_10 = arith.constant 0 : index
    %c0_11 = arith.constant 0 : index
    %5 = vector.load %arg8[%c8, %c0_10, %c0_11] : memref<10x10x8xf32, #tpu.memory_space<vmem>>, vector<2x10x8xf32>
    tpu.vector_store %arg8[%c8, %c0_10, %c0_11], %4 {strides = array<i32>} : memref<10x10x8xf32, #tpu.memory_space<vmem>>, vector<2x10x8xf32>,
    %c0_12 = arith.constant 0 : index
    %c0_13 = arith.constant 0 : index
    %c0_14 = arith.constant 0 : index
    %6 = vector.load %arg8[%c0_12, %c0_13, %c0_14] : memref<10x10x8xf32, #tpu.memory_space<vmem>>, vector<8x8x8xf32>
    %7 = arith.truncf %6 : vector<8x8x8xf32> to vector<8x8x8xbf16>
    %c3 = arith.constant 3 : index
    %c3_15 = arith.constant 3 : index
    %c0_16 = arith.constant 0 : index
    %c0_17 = arith.constant 0 : index
    %8 = vector.load %arg4[%c3, %c3_15, %c0_16, %c0_17] : memref<4x4x8x16xbf16, #tpu.memory_space<vmem>>, vector<1x1x8x16xbf16>
    %9 = vector.shape_cast %8 : vector<1x1x8x16xbf16> to vector<8x16xbf16>
    %cst = arith.constant dense<0.000000e+00> : vector<8x8x16xf32>
    %10 = tpu.matmul %7, %9, %cst {dimension_numbers = #tpu.dot_dimension_numbers<[2], [0], [0, 1], [1], [0, 0, 0, 1, 1, 1], [], []>} : vector<8x8x8xbf16>, vector<8x16xbf16>, vector<8x8x16xf32> -> vector<8x8x16xf32>
    %c0_18 = arith.constant 0 : index
    %c1 = arith.constant 1 : index
    %c0_19 = arith.constant 0 : index
    %11 = vector.load %arg8[%c0_18, %c1, %c0_19] : memref<10x10x8xf32, #tpu.memory_space<vmem>>, vector<8x8x8xf32>
    %12 = arith.truncf %11 : vector<8x8x8xf32> to vector<8x8x8xbf16>
    %c3_20 = arith.constant 3 : index
    %c1_21 = arith.constant 1 : index
    %c0_22 = arith.constant 0 : index
    %c0_23 = arith.constant 0 : index
    %13 = vector.load %arg4[%c3_20, %c1_21, %c0_22, %c0_23] : memref<4x4x8x16xbf16, #tpu.memory_space<vmem>>, vector<1x1x8x16xbf16>
    %14 = vector.shape_cast %13 : vector<1x1x8x16xbf16> to vector<8x16xbf16>
    %cst_24 = arith.constant dense<0.000000e+00> : vector<8x8x16xf32>
    %15 = tpu.matmul %12, %14, %cst_24 {dimension_numbers = #tpu.dot_dimension_numbers<[2], [0], [0, 1], [1], [0, 0, 0, 1, 1, 1], [], []>} : vector<8x8x8xbf16>, vector<8x16xbf16>, vector<8x8x16xf32> -> vector<8x8x16xf32>
    %16 = arith.addf %10, %15 : vector<8x8x16xf32>
    %c1_25 = arith.constant 1 : index
    %c0_26 = arith.constant 0 : index
    %c0_27 = arith.constant 0 : index
    %17 = vector.load %arg8[%c1_25, %c0_26, %c0_27] : memref<10x10x8xf32, #tpu.memory_space<vmem>>, vector<8x8x8xf32>
    %18 = arith.truncf %17 : vector<8x8x8xf32> to vector<8x8x8xbf16>
    %c1_28 = arith.constant 1 : index
    %c3_29 = arith.constant 3 : index
    %c0_30 = arith.constant 0 : index
    %c0_31 = arith.constant 0 : index
    %19 = vector.load %arg4[%c1_28, %c3_29, %c0_30, %c0_31] : memref<4x4x8x16xbf16, #tpu.memory_space<vmem>>, vector<1x1x8x16xbf16>
    %20 = vector.shape_cast %19 : vector<1x1x8x16xbf16> to vector<8x16xbf16>
    %cst_32 = arith.constant dense<0.000000e+00> : vector<8x8x16xf32>
    %21 = tpu.matmul %18, %20, %cst_32 {dimension_numbers = #tpu.dot_dimension_numbers<[2], [0], [0, 1], [1], [0, 0, 0, 1, 1, 1], [], []>} : vector<8x8x8xbf16>, vector<8x16xbf16>, vector<8x8x16xf32> -> vector<8x8x16xf32>
    %22 = arith.addf %16, %21 : vector<8x8x16xf32>
    %c1_33 = arith.constant 1 : index
    %c1_34 = arith.constant 1 : index
    %c0_35 = arith.constant 0 : index
    %23 = vector.load %arg8[%c1_33, %c1_34, %c0_35] : memref<10x10x8xf32, #tpu.memory_space<vmem>>, vector<8x8x8xf32>
    %24 = arith.truncf %23 : vector<8x8x8xf32> to vector<8x8x8xbf16>
    %c1_36 = arith.constant 1 : index
    %c1_37 = arith.constant 1 : index
    %c0_38 = arith.constant 0 : index
    %c0_39 = arith.constant 0 : index
    %25 = vector.load %arg4[%c1_36, %c1_37, %c0_38, %c0_39] : memref<4x4x8x16xbf16, #tpu.memory_space<vmem>>, vector<1x1x8x16xbf16>
    %26 = vector.shape_cast %25 : vector<1x1x8x16xbf16> to vector<8x16xbf16>
    %cst_40 = arith.constant dense<0.000000e+00> : vector<8x8x16xf32>
    %27 = tpu.matmul %24, %26, %cst_40 {dimension_numbers = #tpu.dot_dimension_numbers<[2], [0], [0, 1], [1], [0, 0, 0, 1, 1, 1], [], []>} : vector<8x8x8xbf16>, vector<8x16xbf16>, vector<8x8x16xf32> -> vector<8x8x16xf32>
    %28 = arith.addf %22, %27 : vector<8x8x16xf32>
    %c0_41 = arith.constant 0 : index
    %c0_42 = arith.constant 0 : index
    %29 = vector.load %arg5[%c0_41, %c0_42] : memref<1x16xf32, #tpu.memory_space<vmem>>, vector<1x16xf32>
    %30 = vector.shape_cast %29 : vector<1x16xf32> to vector<16xf32>
    %31 = vector.shape_cast %30 : vector<16xf32> to vector<1x1x16xf32>
    %32 = vector.broadcast %31 : vector<1x1x16xf32> to vector<8x8x16xf32>
    %33 = arith.mulf %28, %32 : vector<8x8x16xf32>
    %c0_43 = arith.constant 0 : index
    %c0_44 = arith.constant 0 : index
    %34 = vector.load %arg6[%c0_43, %c0_44] : memref<1x16xf32, #tpu.memory_space<vmem>>, vector<1x16xf32>
    %35 = vector.shape_cast %34 : vector<1x16xf32> to vector<16xf32>
    %36 = vector.shape_cast %35 : vector<16xf32> to vector<1x1x16xf32>
    %37 = vector.broadcast %36 : vector<1x1x16xf32> to vector<8x8x16xf32>
    %38 = arith.addf %33, %37 : vector<8x8x16xf32>
    %cst_45 = arith.constant 0.000000e+00 : f32
    %39 = vector.broadcast %cst_45 : f32 to vector<8x8x16xf32>
    %40 = arith.maximumf %38, %39 : vector<8x8x16xf32>
    %c0_46 = arith.constant 0 : index
    %c0_47 = arith.constant 0 : index
    %c0_48 = arith.constant 0 : index
    %c0_49 = arith.constant 0 : index
    %c0_50 = arith.constant 0 : index
    %41 = vector.load %arg7[%c0_46, %c0_47, %c0_48, %c0_49, %c0_50] : memref<1x8x2x8x32xf32, #tpu.memory_space<vmem>>, vector<1x8x1x8x16xf32>
    %42 = vector.shape_cast %41 : vector<1x8x1x8x16xf32> to vector<8x8x16xf32>
    %43 = vector.shape_cast %40 : vector<8x8x16xf32> to vector<1x8x1x8x16xf32>
    tpu.vector_store %arg7[%c0_46, %c0_47, %c0_48, %c0_49, %c0_50], %43 {strides = array<i32>} : memref<1x8x2x8x32xf32, #tpu.memory_space<vmem>>, vector<1x8x1x8x16xf32>,
    %c0_51 = arith.constant 0 : index
    %c1_52 = arith.constant 1 : index
    %c0_53 = arith.constant 0 : index
    %44 = vector.load %arg8[%c0_51, %c1_52, %c0_53] : memref<10x10x8xf32, #tpu.memory_space<vmem>>, vector<8x8x8xf32>
    %45 = arith.truncf %44 : vector<8x8x8xf32> to vector<8x8x8xbf16>
    %c3_54 = arith.constant 3 : index
    %c2 = arith.constant 2 : index
    %c0_55 = arith.constant 0 : index
    %c0_56 = arith.constant 0 : index
    %46 = vector.load %arg4[%c3_54, %c2, %c0_55, %c0_56] : memref<4x4x8x16xbf16, #tpu.memory_space<vmem>>, vector<1x1x8x16xbf16>
    %47 = vector.shape_cast %46 : vector<1x1x8x16xbf16> to vector<8x16xbf16>
    %cst_57 = arith.constant dense<0.000000e+00> : vector<8x8x16xf32>
    %48 = tpu.matmul %45, %47, %cst_57 {dimension_numbers = #tpu.dot_dimension_numbers<[2], [0], [0, 1], [1], [0, 0, 0, 1, 1, 1], [], []>} : vector<8x8x8xbf16>, vector<8x16xbf16>, vector<8x8x16xf32> -> vector<8x8x16xf32>
    %c0_58 = arith.constant 0 : index
    %c2_59 = arith.constant 2 : index
    %c0_60 = arith.constant 0 : index
    %49 = vector.load %arg8[%c0_58, %c2_59, %c0_60] : memref<10x10x8xf32, #tpu.memory_space<vmem>>, vector<8x8x8xf32>
    %50 = arith.truncf %49 : vector<8x8x8xf32> to vector<8x8x8xbf16>
    %c3_61 = arith.constant 3 : index
    %c0_62 = arith.constant 0 : index
    %c0_63 = arith.constant 0 : index
    %c0_64 = arith.constant 0 : index
    %51 = vector.load %arg4[%c3_61, %c0_62, %c0_63, %c0_64] : memref<4x4x8x16xbf16, #tpu.memory_space<vmem>>, vector<1x1x8x16xbf16>
    %52 = vector.shape_cast %51 : vector<1x1x8x16xbf16> to vector<8x16xbf16>
    %cst_65 = arith.constant dense<0.000000e+00> : vector<8x8x16xf32>
    %53 = tpu.matmul %50, %52, %cst_65 {dimension_numbers = #tpu.dot_dimension_numbers<[2], [0], [0, 1], [1], [0, 0, 0, 1, 1, 1], [], []>} : vector<8x8x8xbf16>, vector<8x16xbf16>, vector<8x8x16xf32> -> vector<8x8x16xf32>
    %54 = arith.addf %48, %53 : vector<8x8x16xf32>
    %c1_66 = arith.constant 1 : index
    %c1_67 = arith.constant 1 : index
    %c0_68 = arith.constant 0 : index
    %55 = vector.load %arg8[%c1_66, %c1_67, %c0_68] : memref<10x10x8xf32, #tpu.memory_space<vmem>>, vector<8x8x8xf32>
    %56 = arith.truncf %55 : vector<8x8x8xf32> to vector<8x8x8xbf16>
    %c1_69 = arith.constant 1 : index
    %c2_70 = arith.constant 2 : index
    %c0_71 = arith.constant 0 : index
    %c0_72 = arith.constant 0 : index
    %57 = vector.load %arg4[%c1_69, %c2_70, %c0_71, %c0_72] : memref<4x4x8x16xbf16, #tpu.memory_space<vmem>>, vector<1x1x8x16xbf16>
    %58 = vector.shape_cast %57 : vector<1x1x8x16xbf16> to vector<8x16xbf16>
    %cst_73 = arith.constant dense<0.000000e+00> : vector<8x8x16xf32>
    %59 = tpu.matmul %56, %58, %cst_73 {dimension_numbers = #tpu.dot_dimension_numbers<[2], [0], [0, 1], [1], [0, 0, 0, 1, 1, 1], [], []>} : vector<8x8x8xbf16>, vector<8x16xbf16>, vector<8x8x16xf32> -> vector<8x8x16xf32>
    %60 = arith.addf %54, %59 : vector<8x8x16xf32>
    %c1_74 = arith.constant 1 : index
    %c2_75 = arith.constant 2 : index
    %c0_76 = arith.constant 0 : index
    %61 = vector.load %arg8[%c1_74, %c2_75, %c0_76] : memref<10x10x8xf32, #tpu.memory_space<vmem>>, vector<8x8x8xf32>
    %62 = arith.truncf %61 : vector<8x8x8xf32> to vector<8x8x8xbf16>
    %c1_77 = arith.constant 1 : index
    %c0_78 = arith.constant 0 : index
    %c0_79 = arith.constant 0 : index
    %c0_80 = arith.constant 0 : index
    %63 = vector.load %arg4[%c1_77, %c0_78, %c0_79, %c0_80] : memref<4x4x8x16xbf16, #tpu.memory_space<vmem>>, vector<1x1x8x16xbf16>
    %64 = vector.shape_cast %63 : vector<1x1x8x16xbf16> to vector<8x16xbf16>
    %cst_81 = arith.constant dense<0.000000e+00> : vector<8x8x16xf32>
    %65 = tpu.matmul %62, %64, %cst_81 {dimension_numbers = #tpu.dot_dimension_numbers<[2], [0], [0, 1], [1], [0, 0, 0, 1, 1, 1], [], []>} : vector<8x8x8xbf16>, vector<8x16xbf16>, vector<8x8x16xf32> -> vector<8x8x16xf32>
    %66 = arith.addf %60, %65 : vector<8x8x16xf32>
    %c0_82 = arith.constant 0 : index
    %c0_83 = arith.constant 0 : index
    %67 = vector.load %arg5[%c0_82, %c0_83] : memref<1x16xf32, #tpu.memory_space<vmem>>, vector<1x16xf32>
    %68 = vector.shape_cast %67 : vector<1x16xf32> to vector<16xf32>
    %69 = vector.shape_cast %68 : vector<16xf32> to vector<1x1x16xf32>
    %70 = vector.broadcast %69 : vector<1x1x16xf32> to vector<8x8x16xf32>
    %71 = arith.mulf %66, %70 : vector<8x8x16xf32>
    %c0_84 = arith.constant 0 : index
    %c0_85 = arith.constant 0 : index
    %72 = vector.load %arg6[%c0_84, %c0_85] : memref<1x16xf32, #tpu.memory_space<vmem>>, vector<1x16xf32>
    %73 = vector.shape_cast %72 : vector<1x16xf32> to vector<16xf32>
    %74 = vector.shape_cast %73 : vector<16xf32> to vector<1x1x16xf32>
    %75 = vector.broadcast %74 : vector<1x1x16xf32> to vector<8x8x16xf32>
    %76 = arith.addf %71, %75 : vector<8x8x16xf32>
    %cst_86 = arith.constant 0.000000e+00 : f32
    %77 = vector.broadcast %cst_86 : f32 to vector<8x8x16xf32>
    %78 = arith.maximumf %76, %77 : vector<8x8x16xf32>
    %c0_87 = arith.constant 0 : index
    %c0_88 = arith.constant 0 : index
    %c0_89 = arith.constant 0 : index
    %c0_90 = arith.constant 0 : index
    %c16 = arith.constant 16 : index
    %79 = vector.load %arg7[%c0_87, %c0_88, %c0_89, %c0_90, %c16] : memref<1x8x2x8x32xf32, #tpu.memory_space<vmem>>, vector<1x8x1x8x16xf32>
    %80 = vector.shape_cast %79 : vector<1x8x1x8x16xf32> to vector<8x8x16xf32>
    %81 = vector.shape_cast %78 : vector<8x8x16xf32> to vector<1x8x1x8x16xf32>
    tpu.vector_store %arg7[%c0_87, %c0_88, %c0_89, %c0_90, %c16], %81 {strides = array<i32>} : memref<1x8x2x8x32xf32, #tpu.memory_space<vmem>>, vector<1x8x1x8x16xf32>,
    %c1_91 = arith.constant 1 : index
    %c0_92 = arith.constant 0 : index
    %c0_93 = arith.constant 0 : index
    %82 = vector.load %arg8[%c1_91, %c0_92, %c0_93] : memref<10x10x8xf32, #tpu.memory_space<vmem>>, vector<8x8x8xf32>
    %83 = arith.truncf %82 : vector<8x8x8xf32> to vector<8x8x8xbf16>
    %c2_94 = arith.constant 2 : index
    %c3_95 = arith.constant 3 : index
    %c0_96 = arith.constant 0 : index
    %c0_97 = arith.constant 0 : index
    %84 = vector.load %arg4[%c2_94, %c3_95, %c0_96, %c0_97] : memref<4x4x8x16xbf16, #tpu.memory_space<vmem>>, vector<1x1x8x16xbf16>
    %85 = vector.shape_cast %84 : vector<1x1x8x16xbf16> to vector<8x16xbf16>
    %cst_98 = arith.constant dense<0.000000e+00> : vector<8x8x16xf32>
    %86 = tpu.matmul %83, %85, %cst_98 {dimension_numbers = #tpu.dot_dimension_numbers<[2], [0], [0, 1], [1], [0, 0, 0, 1, 1, 1], [], []>} : vector<8x8x8xbf16>, vector<8x16xbf16>, vector<8x8x16xf32> -> vector<8x8x16xf32>
    %c1_99 = arith.constant 1 : index
    %c1_100 = arith.constant 1 : index
    %c0_101 = arith.constant 0 : index
    %87 = vector.load %arg8[%c1_99, %c1_100, %c0_101] : memref<10x10x8xf32, #tpu.memory_space<vmem>>, vector<8x8x8xf32>
    %88 = arith.truncf %87 : vector<8x8x8xf32> to vector<8x8x8xbf16>
    %c2_102 = arith.constant 2 : index
    %c1_103 = arith.constant 1 : index
    %c0_104 = arith.constant 0 : index
    %c0_105 = arith.constant 0 : index
    %89 = vector.load %arg4[%c2_102, %c1_103, %c0_104, %c0_105] : memref<4x4x8x16xbf16, #tpu.memory_space<vmem>>, vector<1x1x8x16xbf16>
    %90 = vector.shape_cast %89 : vector<1x1x8x16xbf16> to vector<8x16xbf16>
    %cst_106 = arith.constant dense<0.000000e+00> : vector<8x8x16xf32>
    %91 = tpu.matmul %88, %90, %cst_106 {dimension_numbers = #tpu.dot_dimension_numbers<[2], [0], [0, 1], [1], [0, 0, 0, 1, 1, 1], [], []>} : vector<8x8x8xbf16>, vector<8x16xbf16>, vector<8x8x16xf32> -> vector<8x8x16xf32>
    %92 = arith.addf %86, %91 : vector<8x8x16xf32>
    %c2_107 = arith.constant 2 : index
    %c0_108 = arith.constant 0 : index
    %c0_109 = arith.constant 0 : index
    %93 = vector.load %arg8[%c2_107, %c0_108, %c0_109] : memref<10x10x8xf32, #tpu.memory_space<vmem>>, vector<8x8x8xf32>
    %94 = arith.truncf %93 : vector<8x8x8xf32> to vector<8x8x8xbf16>
    %c0_110 = arith.constant 0 : index
    %c3_111 = arith.constant 3 : index
    %c0_112 = arith.constant 0 : index
    %c0_113 = arith.constant 0 : index
    %95 = vector.load %arg4[%c0_110, %c3_111, %c0_112, %c0_113] : memref<4x4x8x16xbf16, #tpu.memory_space<vmem>>, vector<1x1x8x16xbf16>
    %96 = vector.shape_cast %95 : vector<1x1x8x16xbf16> to vector<8x16xbf16>
    %cst_114 = arith.constant dense<0.000000e+00> : vector<8x8x16xf32>
    %97 = tpu.matmul %94, %96, %cst_114 {dimension_numbers = #tpu.dot_dimension_numbers<[2], [0], [0, 1], [1], [0, 0, 0, 1, 1, 1], [], []>} : vector<8x8x8xbf16>, vector<8x16xbf16>, vector<8x8x16xf32> -> vector<8x8x16xf32>
    %98 = arith.addf %92, %97 : vector<8x8x16xf32>
    %c2_115 = arith.constant 2 : index
    %c1_116 = arith.constant 1 : index
    %c0_117 = arith.constant 0 : index
    %99 = vector.load %arg8[%c2_115, %c1_116, %c0_117] : memref<10x10x8xf32, #tpu.memory_space<vmem>>, vector<8x8x8xf32>
    %100 = arith.truncf %99 : vector<8x8x8xf32> to vector<8x8x8xbf16>
    %c0_118 = arith.constant 0 : index
    %c1_119 = arith.constant 1 : index
    %c0_120 = arith.constant 0 : index
    %c0_121 = arith.constant 0 : index
    %101 = vector.load %arg4[%c0_118, %c1_119, %c0_120, %c0_121] : memref<4x4x8x16xbf16, #tpu.memory_space<vmem>>, vector<1x1x8x16xbf16>
    %102 = vector.shape_cast %101 : vector<1x1x8x16xbf16> to vector<8x16xbf16>
    %cst_122 = arith.constant dense<0.000000e+00> : vector<8x8x16xf32>
    %103 = tpu.matmul %100, %102, %cst_122 {dimension_numbers = #tpu.dot_dimension_numbers<[2], [0], [0, 1], [1], [0, 0, 0, 1, 1, 1], [], []>} : vector<8x8x8xbf16>, vector<8x16xbf16>, vector<8x8x16xf32> -> vector<8x8x16xf32>
    %104 = arith.addf %98, %103 : vector<8x8x16xf32>
    %c0_123 = arith.constant 0 : index
    %c0_124 = arith.constant 0 : index
    %105 = vector.load %arg5[%c0_123, %c0_124] : memref<1x16xf32, #tpu.memory_space<vmem>>, vector<1x16xf32>
    %106 = vector.shape_cast %105 : vector<1x16xf32> to vector<16xf32>
    %107 = vector.shape_cast %106 : vector<16xf32> to vector<1x1x16xf32>
    %108 = vector.broadcast %107 : vector<1x1x16xf32> to vector<8x8x16xf32>
    %109 = arith.mulf %104, %108 : vector<8x8x16xf32>
    %c0_125 = arith.constant 0 : index
    %c0_126 = arith.constant 0 : index
    %110 = vector.load %arg6[%c0_125, %c0_126] : memref<1x16xf32, #tpu.memory_space<vmem>>, vector<1x16xf32>
    %111 = vector.shape_cast %110 : vector<1x16xf32> to vector<16xf32>
    %112 = vector.shape_cast %111 : vector<16xf32> to vector<1x1x16xf32>
    %113 = vector.broadcast %112 : vector<1x1x16xf32> to vector<8x8x16xf32>
    %114 = arith.addf %109, %113 : vector<8x8x16xf32>
    %cst_127 = arith.constant 0.000000e+00 : f32
    %115 = vector.broadcast %cst_127 : f32 to vector<8x8x16xf32>
    %116 = arith.maximumf %114, %115 : vector<8x8x16xf32>
    %c0_128 = arith.constant 0 : index
    %c0_129 = arith.constant 0 : index
    %c1_130 = arith.constant 1 : index
    %c0_131 = arith.constant 0 : index
    %c0_132 = arith.constant 0 : index
    %117 = vector.load %arg7[%c0_128, %c0_129, %c1_130, %c0_131, %c0_132] : memref<1x8x2x8x32xf32, #tpu.memory_space<vmem>>, vector<1x8x1x8x16xf32>
    %118 = vector.shape_cast %117 : vector<1x8x1x8x16xf32> to vector<8x8x16xf32>
    %119 = vector.shape_cast %116 : vector<8x8x16xf32> to vector<1x8x1x8x16xf32>
    tpu.vector_store %arg7[%c0_128, %c0_129, %c1_130, %c0_131, %c0_132], %119 {strides = array<i32>} : memref<1x8x2x8x32xf32, #tpu.memory_space<vmem>>, vector<1x8x1x8x16xf32>,
    %c1_133 = arith.constant 1 : index
    %c1_134 = arith.constant 1 : index
    %c0_135 = arith.constant 0 : index
    %120 = vector.load %arg8[%c1_133, %c1_134, %c0_135] : memref<10x10x8xf32, #tpu.memory_space<vmem>>, vector<8x8x8xf32>
    %121 = arith.truncf %120 : vector<8x8x8xf32> to vector<8x8x8xbf16>
    %c2_136 = arith.constant 2 : index
    %c2_137 = arith.constant 2 : index
    %c0_138 = arith.constant 0 : index
    %c0_139 = arith.constant 0 : index
    %122 = vector.load %arg4[%c2_136, %c2_137, %c0_138, %c0_139] : memref<4x4x8x16xbf16, #tpu.memory_space<vmem>>, vector<1x1x8x16xbf16>
    %123 = vector.shape_cast %122 : vector<1x1x8x16xbf16> to vector<8x16xbf16>
    %cst_140 = arith.constant dense<0.000000e+00> : vector<8x8x16xf32>
    %124 = tpu.matmul %121, %123, %cst_140 {dimension_numbers = #tpu.dot_dimension_numbers<[2], [0], [0, 1], [1], [0, 0, 0, 1, 1, 1], [], []>} : vector<8x8x8xbf16>, vector<8x16xbf16>, vector<8x8x16xf32> -> vector<8x8x16xf32>
    %c1_141 = arith.constant 1 : index
    %c2_142 = arith.constant 2 : index
    %c0_143 = arith.constant 0 : index
    %125 = vector.load %arg8[%c1_141, %c2_142, %c0_143] : memref<10x10x8xf32, #tpu.memory_space<vmem>>, vector<8x8x8xf32>
    %126 = arith.truncf %125 : vector<8x8x8xf32> to vector<8x8x8xbf16>
    %c2_144 = arith.constant 2 : index
    %c0_145 = arith.constant 0 : index
    %c0_146 = arith.constant 0 : index
    %c0_147 = arith.constant 0 : index
    %127 = vector.load %arg4[%c2_144, %c0_145, %c0_146, %c0_147] : memref<4x4x8x16xbf16, #tpu.memory_space<vmem>>, vector<1x1x8x16xbf16>
    %128 = vector.shape_cast %127 : vector<1x1x8x16xbf16> to vector<8x16xbf16>
    %cst_148 = arith.constant dense<0.000000e+00> : vector<8x8x16xf32>
    %129 = tpu.matmul %126, %128, %cst_148 {dimension_numbers = #tpu.dot_dimension_numbers<[2], [0], [0, 1], [1], [0, 0, 0, 1, 1, 1], [], []>} : vector<8x8x8xbf16>, vector<8x16xbf16>, vector<8x8x16xf32> -> vector<8x8x16xf32>
    %130 = arith.addf %124, %129 : vector<8x8x16xf32>
    %c2_149 = arith.constant 2 : index
    %c1_150 = arith.constant 1 : index
    %c0_151 = arith.constant 0 : index
    %131 = vector.load %arg8[%c2_149, %c1_150, %c0_151] : memref<10x10x8xf32, #tpu.memory_space<vmem>>, vector<8x8x8xf32>
    %132 = arith.truncf %131 : vector<8x8x8xf32> to vector<8x8x8xbf16>
    %c0_152 = arith.constant 0 : index
    %c2_153 = arith.constant 2 : index
    %c0_154 = arith.constant 0 : index
    %c0_155 = arith.constant 0 : index
    %133 = vector.load %arg4[%c0_152, %c2_153, %c0_154, %c0_155] : memref<4x4x8x16xbf16, #tpu.memory_space<vmem>>, vector<1x1x8x16xbf16>
    %134 = vector.shape_cast %133 : vector<1x1x8x16xbf16> to vector<8x16xbf16>
    %cst_156 = arith.constant dense<0.000000e+00> : vector<8x8x16xf32>
    %135 = tpu.matmul %132, %134, %cst_156 {dimension_numbers = #tpu.dot_dimension_numbers<[2], [0], [0, 1], [1], [0, 0, 0, 1, 1, 1], [], []>} : vector<8x8x8xbf16>, vector<8x16xbf16>, vector<8x8x16xf32> -> vector<8x8x16xf32>
    %136 = arith.addf %130, %135 : vector<8x8x16xf32>
    %c2_157 = arith.constant 2 : index
    %c2_158 = arith.constant 2 : index
    %c0_159 = arith.constant 0 : index
    %137 = vector.load %arg8[%c2_157, %c2_158, %c0_159] : memref<10x10x8xf32, #tpu.memory_space<vmem>>, vector<8x8x8xf32>
    %138 = arith.truncf %137 : vector<8x8x8xf32> to vector<8x8x8xbf16>
    %c0_160 = arith.constant 0 : index
    %c0_161 = arith.constant 0 : index
    %c0_162 = arith.constant 0 : index
    %c0_163 = arith.constant 0 : index
    %139 = vector.load %arg4[%c0_160, %c0_161, %c0_162, %c0_163] : memref<4x4x8x16xbf16, #tpu.memory_space<vmem>>, vector<1x1x8x16xbf16>
    %140 = vector.shape_cast %139 : vector<1x1x8x16xbf16> to vector<8x16xbf16>
    %cst_164 = arith.constant dense<0.000000e+00> : vector<8x8x16xf32>
    %141 = tpu.matmul %138, %140, %cst_164 {dimension_numbers = #tpu.dot_dimension_numbers<[2], [0], [0, 1], [1], [0, 0, 0, 1, 1, 1], [], []>} : vector<8x8x8xbf16>, vector<8x16xbf16>, vector<8x8x16xf32> -> vector<8x8x16xf32>
    %142 = arith.addf %136, %141 : vector<8x8x16xf32>
    %c0_165 = arith.constant 0 : index
    %c0_166 = arith.constant 0 : index
    %143 = vector.load %arg5[%c0_165, %c0_166] : memref<1x16xf32, #tpu.memory_space<vmem>>, vector<1x16xf32>
    %144 = vector.shape_cast %143 : vector<1x16xf32> to vector<16xf32>
    %145 = vector.shape_cast %144 : vector<16xf32> to vector<1x1x16xf32>
    %146 = vector.broadcast %145 : vector<1x1x16xf32> to vector<8x8x16xf32>
    %147 = arith.mulf %142, %146 : vector<8x8x16xf32>
    %c0_167 = arith.constant 0 : index
    %c0_168 = arith.constant 0 : index
    %148 = vector.load %arg6[%c0_167, %c0_168] : memref<1x16xf32, #tpu.memory_space<vmem>>, vector<1x16xf32>
    %149 = vector.shape_cast %148 : vector<1x16xf32> to vector<16xf32>
    %150 = vector.shape_cast %149 : vector<16xf32> to vector<1x1x16xf32>
    %151 = vector.broadcast %150 : vector<1x1x16xf32> to vector<8x8x16xf32>
    %152 = arith.addf %147, %151 : vector<8x8x16xf32>
    %cst_169 = arith.constant 0.000000e+00 : f32
    %153 = vector.broadcast %cst_169 : f32 to vector<8x8x16xf32>
    %154 = arith.maximumf %152, %153 : vector<8x8x16xf32>
    %c0_170 = arith.constant 0 : index
    %c0_171 = arith.constant 0 : index
    %c1_172 = arith.constant 1 : index
    %c0_173 = arith.constant 0 : index
    %c16_174 = arith.constant 16 : index
    %155 = vector.load %arg7[%c0_170, %c0_171, %c1_172, %c0_173, %c16_174] : memref<1x8x2x8x32xf32, #tpu.memory_space<vmem>>, vector<1x8x1x8x16xf32>
    %156 = vector.shape_cast %155 : vector<1x8x1x8x16xf32> to vector<8x8x16xf32>
    %157 = vector.shape_cast %154 : vector<8x8x16xf32> to vector<1x8x1x8x16xf32>
    tpu.vector_store %arg7[%c0_170, %c0_171, %c1_172, %c0_173, %c16_174], %157 {strides = array<i32>} : memref<1x8x2x8x32xf32, #tpu.memory_space<vmem>>, vector<1x8x1x8x16xf32>,
    return
  }
  func.func @transform_0(%arg0: i32, %arg1: i32) -> (i32, i32, i32, i32) {
    %c0_i32 = arith.constant 0 : i32
    %c0_i32_0 = arith.constant 0 : i32
    %c0_i32_1 = arith.constant 0 : i32
    return %arg0, %arg1, %c0_i32, %c0_i32_0 : i32, i32, i32, i32
  }
  func.func @transform_1(%arg0: i32, %arg1: i32) -> (i32, i32, i32, i32) {
    %c1_i32 = arith.constant 1 : i32
    %0 = arith.addi %arg1, %c1_i32 : i32
    %c4_i32 = arith.constant 4 : i32
    %1 = arith.muli %0, %c4_i32 : i32
    %c0_i32 = arith.constant 0 : i32
    %c0_i32_0 = arith.constant 0 : i32
    %c0_i32_1 = arith.constant 0 : i32
    return %arg0, %1, %c0_i32, %c0_i32_0 : i32, i32, i32, i32
  }
  func.func @transform_2(%arg0: i32, %arg1: i32) -> (i32, i32, i32, i32) {
    %c0_i32 = arith.constant 0 : i32
    %c0_i32_0 = arith.constant 0 : i32
    %c0_i32_1 = arith.constant 0 : i32
    %c0_i32_2 = arith.constant 0 : i32
    %c0_i32_3 = arith.constant 0 : i32
    return %c0_i32, %c0_i32_0, %c0_i32_1, %c0_i32_2 : i32, i32, i32, i32
  }
  func.func @transform_3(%arg0: i32, %arg1: i32) -> (i32, i32) {
    %c0_i32 = arith.constant 0 : i32
    %c0_i32_0 = arith.constant 0 : i32
    %c0_i32_1 = arith.constant 0 : i32
    return %c0_i32, %c0_i32_0 : i32, i32
  }
  func.func @transform_4(%arg0: i32, %arg1: i32) -> (i32, i32) {
    %c0_i32 = arith.constant 0 : i32
    %c0_i32_0 = arith.constant 0 : i32
    %c0_i32_1 = arith.constant 0 : i32
    return %c0_i32, %c0_i32_0 : i32, i32
  }
  func.func @transform_5(%arg0: i32, %arg1: i32) -> (i32, i32, i32, i32, i32) {
    %c0_i32 = arith.constant 0 : i32
    %c0_i32_0 = arith.constant 0 : i32
    %c0_i32_1 = arith.constant 0 : i32
    %c0_i32_2 = arith.constant 0 : i32
    return %arg0, %arg1, %c0_i32, %c0_i32_0, %c0_i32_1 : i32, i32, i32, i32, i32
  }
}

</mosaic_0001>

<llo_original>
// kernel: tpu_custom_call.1
$region0: #{tpu_custom_call.1}
  #allocation0 [shape = 'u32[]', space=smem, size = 0x4, offset = 0x4, fixed_abs, tag = 'smem constant byte address 0x4 - core index']
  #allocation1 [shape = 'u32[144,128]{1,0:T(1,128)}', space=vmem, size = 0x12000, scoped, tag = 'internal scratch']
  #allocation2 [shape = 'f32[10,10,8]{2,1,0:T(8,128)}', space=vmem, size = 0x14000, scoped, tag = 'scratch operand']
  %s0 = inlined_call_operand.hbm [shape: f32[2,10,10,8], index: 0, kind: input, shape index: {}]
  %s1 = inlined_call_operand.hbm [shape: f32[2,10,10,8], index: 1, kind: input, shape index: {}]
  %s2 = inlined_call_operand.hbm [shape: bf16[4,4,8,16], index: 2, kind: input, shape index: {}]
  %s3 = inlined_call_operand.hbm [shape: f32[1,16], index: 3, kind: input, shape index: {}]
  %s4 = inlined_call_operand.hbm [shape: f32[1,16], index: 4, kind: input, shape index: {}]
  %s5 = inlined_call_operand.hbm [shape: f32[2,8,2,8,32], index: 5, kind: output, shape index: {}]
  %s6 = sld [smem:[#allocation0]]
  $region73: #{tpu_custom_call.1} parent=0
    _
  %s8 = ssub.s32 1, %s6
  %s9 = scalar_select 0, %s8, %s6
  $region1: #{tpu_custom_call.1} parent=0
    #allocation3 [shape = 'u8[131072]{0}', space=vmem, size = 0x20000, scoped, tag = 'input window, operand 0']
    #allocation4 [shape = 's32[2]{0}', space=sflag, size = 0x8, scoped, tag = 'scoped memory for tpu_custom_call.1']
    #allocation5 [shape = 's32[2]{0}', space=sflag, size = 0x8, scoped, tag = 'scoped memory for tpu_custom_call.1']
    #allocation6 [shape = 'u8[32768]{0}', space=vmem, size = 0x8000, scoped, tag = 'input window, operand 1']
    #allocation7 [shape = 's32[2]{0}', space=sflag, size = 0x8, scoped, tag = 'scoped memory for tpu_custom_call.1']
    #allocation8 [shape = 'u8[32768]{0}', space=vmem, size = 0x8000, scoped, tag = 'input window, operand 2, single buffered']
    #allocation9 [shape = 'u8[512]{0}', space=vmem, size = 0x400, scoped, tag = 'input window, operand 3, single buffered']
    #allocation10 [shape = 's32[1]{0}', space=sflag, size = 0x4, scoped, tag = 'scoped memory for tpu_custom_call.1']
    #allocation11 [shape = 'u8[512]{0}', space=vmem, size = 0x400, scoped, tag = 'input window, operand 4, single buffered']
    #allocation12 [shape = 'u8[131072]{0}', space=vmem, size = 0x20000, scoped, tag = 'output window, operand 0']
    %10 = vsyncpa [#allocation4], 0
    %s11 = scalar_lea.sflag [#allocation4], 1
    %12 = vsyncpa %s11, 0
    %13 = vsyncpa [#allocation7], 0
    %s14 = scalar_lea.sflag [#allocation7], 1
    %15 = vsyncpa %s14, 0
    %16 = vsyncpa [#allocation10], 0
    %17 = vsyncpa [#allocation5], 0
    %s18 = scalar_lea.sflag [#allocation5], 1
    %19 = vsyncpa %s18, 0
    loop: start=0, step=1, limit=4
    $region2: #{tpu_custom_call.1} parent=1 // loop_pre_header
      _
    $region3: #{tpu_custom_call.1} parent=1 // loop_header
      %s21 = sphi 0, %s25
      %p22 = scmp.ge.s32.totalorder %s21, 4
      %s28 = sphi 0, %s40
      %s29 = sphi 0, %s36
      %s30 = sphi 0, %s28
      %s31 = sphi 0, %s29
      %s32 = sphi 0, %s30
      %s33 = sphi 0, %s31
      %s45 = sphi 0, %s47
      %s48 = sphi 0, %s45
      %s49 = sphi 0, %s48
      %s65 = sphi 0, %s49
      %s77 = sphi 0, %s79
      %s80 = sphi 0, %s77
      %s81 = sphi 0, %s80
      %s97 = sphi 0, %s81
      %s101 = sphi 0, %s101
      %s103 = sphi 0, %s101
      %s104 = sphi 0, %s103
      %s118 = sphi 0, %s104
      %s122 = sphi 0, %s122
      %s124 = sphi 0, %s122
      %s125 = sphi 0, %s124
      %s139 = sphi 0, %s125
      %s143 = sphi 0, %s143
      %s145 = sphi 0, %s143
      %s146 = sphi 0, %s145
      %s160 = sphi 0, %s146
      %s168 = sphi 0, %s170
      %s171 = sphi 0, %s168
      %s172 = sphi 0, %s171
      %s188 = sphi 0, %s172
    $region4: #{tpu_custom_call.1} parent=1 // loop_header_branch
      %24 = sbr.rel (%p22) target = $region8
    $region5: #{tpu_custom_call.1} parent=1 // loop_body
      %s26 = ssub.s32 %s21, 1
      %s27 = ssub.s32 %s21, 2
      %s34 = sadd.s32 1, %s29
      %p35 = scmp.ge.s32.totalorder %s34, 1
      %s36 = scalar_select %p35, 0, %s34
      %s37 = sadd.s32 1, %s28
      %s38 = scalar_select %p35, %s37, %s28
      %p39 = scmp.ge.s32.totalorder %s38, 2
      %s40 = scalar_select %p39, 0, %s38
      %s41 = ssub.s32 %s28, %s40
      %s42 = ssub.s32 %s29, %s36
      %s43 = sor.u32 %s41, %s42
      %p44 = scmp.eq.s32.totalorder %s43, 0
      %s46 = sadd.s32 %s45, 1
      %s47 = scalar_select %p44, %s45, %s46
      %p50 = pneg %p44
      %p51 = scmp.eq.s32.totalorder %s21, 1
      %p52 = por %p50, %p51
      %p53 = scmp.ne.s32.totalorder %s45, %s48
      %p54 = scmp.eq.s32.totalorder %s21, 0
      %p55 = por %p53, %p54
      %p56 = scmp.ne.s32.totalorder %s45, %s48
      %p57 = scmp.eq.s32.totalorder %s26, 1
      %p58 = por %p56, %p57
      %p59 = scmp.ne.s32.totalorder %s48, %s49
      %p60 = scmp.eq.s32.totalorder %s26, 0
      %p61 = por %p59, %p60
      %p62 = scmp.ne.s32.totalorder %s48, %s49
      %p63 = scmp.eq.s32.totalorder %s27, 1
      %p64 = por %p62, %p63
      %p66 = scmp.ne.s32.totalorder %s49, %s65
      %p67 = scmp.eq.s32.totalorder %s27, 0
      %p68 = por %p66, %p67
      %s69 = sadd.s32 %s29, 1
      %s70 = smul.u32 %s69, 4
      %s71 = sadd.s32 %s36, 1
      %s72 = smul.u32 %s71, 4
      %s73 = ssub.s32 %s28, %s40
      %s74 = ssub.s32 %s70, %s72
      %s75 = sor.u32 %s73, %s74
      %p76 = scmp.eq.s32.totalorder %s75, 0
      %s78 = sadd.s32 %s77, 1
      %s79 = scalar_select %p76, %s77, %s78
      %p82 = pneg %p76
      %p83 = scmp.eq.s32.totalorder %s21, 1
      %p84 = por %p82, %p83
      %p85 = scmp.ne.s32.totalorder %s77, %s80
      %p86 = scmp.eq.s32.totalorder %s21, 0
      %p87 = por %p85, %p86
      %p88 = scmp.ne.s32.totalorder %s77, %s80
      %p89 = scmp.eq.s32.totalorder %s26, 1
      %p90 = por %p88, %p89
      %p91 = scmp.ne.s32.totalorder %s80, %s81
      %p92 = scmp.eq.s32.totalorder %s26, 0
      %p93 = por %p91, %p92
      %p94 = scmp.ne.s32.totalorder %s80, %s81
      %p95 = scmp.eq.s32.totalorder %s27, 1
      %p96 = por %p94, %p95
      %p98 = scmp.ne.s32.totalorder %s81, %s97
      %p99 = scmp.eq.s32.totalorder %s27, 0
      %p100 = por %p98, %p99
      %s102 = sadd.s32 %s101, 1
      %p105 = scmp.eq.s32.totalorder %s21, 1
      %p106 = scmp.ne.s32.totalorder %s101, %s103
      %p107 = scmp.eq.s32.totalorder %s21, 0
      %p108 = por %p106, %p107
      %p109 = scmp.ne.s32.totalorder %s101, %s103
      %p110 = scmp.eq.s32.totalorder %s26, 1
      %p111 = por %p109, %p110
      %p112 = scmp.ne.s32.totalorder %s103, %s104
      %p113 = scmp.eq.s32.totalorder %s26, 0
      %p114 = por %p112, %p113
      %p115 = scmp.ne.s32.totalorder %s103, %s104
      %p116 = scmp.eq.s32.totalorder %s27, 1
      %p117 = por %p115, %p116
      %p119 = scmp.ne.s32.totalorder %s104, %s118
      %p120 = scmp.eq.s32.totalorder %s27, 0
      %p121 = por %p119, %p120
      %s123 = sadd.s32 %s122, 1
      %p126 = scmp.eq.s32.totalorder %s21, 1
      %p127 = scmp.ne.s32.totalorder %s122, %s124
      %p128 = scmp.eq.s32.totalorder %s21, 0
      %p129 = por %p127, %p128
      %p130 = scmp.ne.s32.totalorder %s122, %s124
      %p131 = scmp.eq.s32.totalorder %s26, 1
      %p132 = por %p130, %p131
      %p133 = scmp.ne.s32.totalorder %s124, %s125
      %p134 = scmp.eq.s32.totalorder %s26, 0
      %p135 = por %p133, %p134
      %p136 = scmp.ne.s32.totalorder %s124, %s125
      %p137 = scmp.eq.s32.totalorder %s27, 1
      %p138 = por %p136, %p137
      %p140 = scmp.ne.s32.totalorder %s125, %s139
      %p141 = scmp.eq.s32.totalorder %s27, 0
      %p142 = por %p140, %p141
      %s144 = sadd.s32 %s143, 1
      %p147 = scmp.eq.s32.totalorder %s21, 1
      %p148 = scmp.ne.s32.totalorder %s143, %s145
      %p149 = scmp.eq.s32.totalorder %s21, 0
      %p150 = por %p148, %p149
      %p151 = scmp.ne.s32.totalorder %s143, %s145
      %p152 = scmp.eq.s32.totalorder %s26, 1
      %p153 = por %p151, %p152
      %p154 = scmp.ne.s32.totalorder %s145, %s146
      %p155 = scmp.eq.s32.totalorder %s26, 0
      %p156 = por %p154, %p155
      %p157 = scmp.ne.s32.totalorder %s145, %s146
      %p158 = scmp.eq.s32.totalorder %s27, 1
      %p159 = por %p157, %p158
      %p161 = scmp.ne.s32.totalorder %s146, %s160
      %p162 = scmp.eq.s32.totalorder %s27, 0
      %p163 = por %p161, %p162
      %s164 = ssub.s32 %s28, %s40
      %s165 = ssub.s32 %s29, %s36
      %s166 = sor.u32 %s164, %s165
      %p167 = scmp.eq.s32.totalorder %s166, 0
      %s169 = sadd.s32 %s168, 1
      %s170 = scalar_select %p167, %s168, %s169
      %p173 = pneg %p167
      %p174 = scmp.eq.s32.totalorder %s21, 1
      %p175 = por %p173, %p174
      %p176 = scmp.ne.s32.totalorder %s168, %s171
      %p177 = scmp.eq.s32.totalorder %s21, 0
      %p178 = por %p176, %p177
      %p179 = scmp.ne.s32.totalorder %s168, %s171
      %p180 = scmp.eq.s32.totalorder %s26, 1
      %p181 = por %p179, %p180
      %p182 = scmp.ne.s32.totalorder %s171, %s172
      %p183 = scmp.eq.s32.totalorder %s26, 0
      %p184 = por %p182, %p183
      %p185 = scmp.ne.s32.totalorder %s171, %s172
      %p186 = scmp.eq.s32.totalorder %s27, 1
      %p187 = por %p185, %p186
      %p189 = scmp.ne.s32.totalorder %s172, %s188
      %p190 = scmp.eq.s32.totalorder %s27, 0
      %p191 = por %p189, %p190
      %p192 = scmp.le.s32.totalorder 1, %s21
      %p193 = scmp.lt.s32.totalorder %s21, 3
      %p194 = pnand %p192, %p193
      %p195 = pneg %p194
      // Predicated region
      $region9: #{tpu_custom_call.1} parent=5 // pred_check
        _
      $region10: #{tpu_custom_call.1} parent=5 // pred_check_branch
        %197 = sbr.rel (%p194) target = $region12
      $region11: #{tpu_custom_call.1} parent=5 // pred_region
        %s198 = ssub.s32 %s21, 1
        // Predicated region
        $region13: #{tpu_custom_call.1} parent=11 // pred_check
          %p199 = pneg %p114
        $region14: #{tpu_custom_call.1} parent=11 // pred_check_branch
          %201 = sbr.rel (%p199) target = $region16
        $region15: #{tpu_custom_call.1} parent=11 // pred_region
          %s203 = ssub.s32 1024, 1024
          %204 = vsyncadd [#allocation7], %s203
          %s205 = sshll.u32 [#allocation8], 4
          %s206 = int_to_ptr.vmem [resolvable:$true] %s205
          %211 = dma.hbm_to_vmem [thread:$0]  %s2, 1024, %s206, [#allocation7], 64, 64, 4
        $region16: #{tpu_custom_call.1} parent=11 // pred_fallthru
          _
        // Predicated region
        $region17: #{tpu_custom_call.1} parent=11 // pred_check
          %p212 = pneg %p135
        $region18: #{tpu_custom_call.1} parent=11 // pred_check_branch
          %214 = sbr.rel (%p212) target = $region20
        $region19: #{tpu_custom_call.1} parent=11 // pred_region
          %s216 = ssub.s32 16, 16
          %217 = vsyncadd [#allocation10], %s216
          %s219 = sshll.u32 [#allocation9], 4
          %s220 = int_to_ptr.vmem [resolvable:$true] %s219
          %222 = dma.hbm_to_vmem [thread:$0]  %s3, 16, %s220, [#allocation10]
        $region20: #{tpu_custom_call.1} parent=11 // pred_fallthru
          _
        // Predicated region
        $region21: #{tpu_custom_call.1} parent=11 // pred_check
          %p223 = pneg %p156
        $region22: #{tpu_custom_call.1} parent=11 // pred_check_branch
          %225 = sbr.rel (%p223) target = $region24
        $region23: #{tpu_custom_call.1} parent=11 // pred_region
          %s227 = ssub.s32 16, 16
          %228 = vsyncadd [#allocation10], %s227
          %s230 = sshll.u32 [#allocation11], 4
          %s231 = int_to_ptr.vmem [resolvable:$true] %s230
          %233 = dma.hbm_to_vmem [thread:$0]  %s4, 16, %s231, [#allocation10]
        $region24: #{tpu_custom_call.1} parent=11 // pred_fallthru
          _
      $region12: #{tpu_custom_call.1} parent=5 // pred_fallthru
        _
      %p234 = scmp.lt.s32.totalorder %s21, 2
      // Predicated region
      $region25: #{tpu_custom_call.1} parent=5 // pred_check
        %p235 = pneg %p234
      $region26: #{tpu_custom_call.1} parent=5 // pred_check_branch
        %237 = sbr.rel (%p235) target = $region28
      $region27: #{tpu_custom_call.1} parent=5 // pred_region
        // Predicated region
        $region29: #{tpu_custom_call.1} parent=27 // pred_check
          %p238 = pneg %p55
        $region30: #{tpu_custom_call.1} parent=27 // pred_check_branch
          %240 = sbr.rel (%p238) target = $region32
        $region31: #{tpu_custom_call.1} parent=27 // pred_region
          %s241 = sand.u32 %s45, 1
          %s242 = scalar_lea.sflag [#allocation4], %s241
          %s243 = sand.u32 %s45, 1
          %s244 = smul.addr %s243, 128
          %s245 = scalar_lea.vmem [#allocation3], %s244
          %s246 = smul.u32 8, %s29
          %s247 = ssub.s32 10, %s246
          %p248 = scmp.lt.s32.totalorder %s247, 8
          %s249 = scalar_select %p248, %s247, 8
          %s250 = smul.u32 128, %s249
          %s251 = smul.u32 %s250, 2
          %s253 = ssub.s32 2048, %s251
          %254 = vsyncadd %s242, %s253
          %p255 = scmp.ne.s32.totalorder 0, %s251
          %s256 = smul.addr %s246, 2
          %s257 = smul.addr %s28, 20
          %s258 = sadd.s32 %s256, %s257
          %s259 = smul.addr %s258, 128
          %s260 = scalar_lea.hbm %s0, %s259
          %s261 = smul.u32 %s249, 2
          %s262 = smul.u32 8, %s261
          %s263 = sshll.u32 %s245, 4
          %s264 = int_to_ptr.vmem [resolvable:$true] %s263
          %s265 = sshll.u32 %s262, 4
          %269 = dma.hbm_to_vmem [thread:$0]  (%p255), %s260, %s265, %s264, %s242, 128, 128, 8
        $region32: #{tpu_custom_call.1} parent=27 // pred_fallthru
          _
        // Predicated region
        $region33: #{tpu_custom_call.1} parent=27 // pred_check
          %p270 = pneg %p87
        $region34: #{tpu_custom_call.1} parent=27 // pred_check_branch
          %272 = sbr.rel (%p270) target = $region36
        $region35: #{tpu_custom_call.1} parent=27 // pred_region
          %s273 = sand.u32 %s21, 1
          %s274 = scalar_lea.sflag [#allocation7], %s273
          %s275 = sand.u32 %s77, 1
          %s276 = smul.addr %s275, 32
          %s277 = scalar_lea.vmem [#allocation6], %s276
          %s278 = sadd.s32 %s29, 1
          %s279 = smul.u32 %s278, 4
          %s280 = smul.u32 2, %s279
          %s282 = ssub.s32 512, 512
          %283 = vsyncadd %s274, %s282
          %s284 = smul.addr %s280, 2
          %s285 = smul.addr %s28, 20
          %s286 = sadd.s32 %s284, %s285
          %s287 = smul.addr %s286, 128
          %s288 = scalar_lea.hbm %s1, %s287
          %s289 = sshll.u32 %s277, 4
          %s290 = int_to_ptr.vmem [resolvable:$true] %s289
          %295 = dma.hbm_to_vmem [thread:$0]  %s288, 512, %s290, %s274, 128, 128, 8
        $region36: #{tpu_custom_call.1} parent=27 // pred_fallthru
          _
      $region28: #{tpu_custom_call.1} parent=5 // pred_fallthru
        _
      %p296 = scmp.le.s32.totalorder 1, %s21
      %p297 = scmp.lt.s32.totalorder %s21, 3
      %p298 = pnand %p296, %p297
      %p299 = pneg %p298
      // Predicated region
      $region37: #{tpu_custom_call.1} parent=5 // pred_check
        _
      $region38: #{tpu_custom_call.1} parent=5 // pred_check_branch
        %301 = sbr.rel (%p298) target = $region40
      $region39: #{tpu_custom_call.1} parent=5 // pred_region
        %s302 = ssub.s32 %s21, 1
        %s303 = sand.u32 %s48, 1
        %s304 = scalar_lea.sflag [#allocation4], %s303
        %s305 = sand.u32 %s48, 1
        %s306 = smul.addr %s305, 128
        %s307 = scalar_lea.vmem [#allocation3], %s306
        // Predicated region
        $region41: #{tpu_custom_call.1} parent=39 // pred_check
          %p308 = pneg %p61
        $region42: #{tpu_custom_call.1} parent=39 // pred_check_branch
          %310 = sbr.rel (%p308) target = $region44
        $region43: #{tpu_custom_call.1} parent=39 // pred_region
          %311 = dma.done %s304, 2048
        $region44: #{tpu_custom_call.1} parent=39 // pred_fallthru
          _
        %s312 = sand.u32 %s26, 1
        %s313 = scalar_lea.sflag [#allocation7], %s312
        %s314 = sand.u32 %s80, 1
        %s315 = smul.addr %s314, 32
        %s316 = scalar_lea.vmem [#allocation6], %s315
        // Predicated region
        $region45: #{tpu_custom_call.1} parent=39 // pred_check
          %p317 = pneg %p93
        $region46: #{tpu_custom_call.1} parent=39 // pred_check_branch
          %319 = sbr.rel (%p317) target = $region48
        $region47: #{tpu_custom_call.1} parent=39 // pred_region
          %320 = dma.done %s313, 512
        $region48: #{tpu_custom_call.1} parent=39 // pred_fallthru
          _
        // Predicated region
        $region49: #{tpu_custom_call.1} parent=39 // pred_check
          %p321 = pneg %p114
        $region50: #{tpu_custom_call.1} parent=39 // pred_check_branch
          %323 = sbr.rel (%p321) target = $region52
        $region51: #{tpu_custom_call.1} parent=39 // pred_region
          %324 = dma.done [#allocation7], 1024
        $region52: #{tpu_custom_call.1} parent=39 // pred_fallthru
          _
        // Predicated region
        $region53: #{tpu_custom_call.1} parent=39 // pred_check
          %p325 = pneg %p135
        $region54: #{tpu_custom_call.1} parent=39 // pred_check_branch
          %327 = sbr.rel (%p325) target = $region56
        $region55: #{tpu_custom_call.1} parent=39 // pred_region
          %328 = dma.done [#allocation10], 16
        $region56: #{tpu_custom_call.1} parent=39 // pred_fallthru
          _
        // Predicated region
        $region57: #{tpu_custom_call.1} parent=39 // pred_check
          %p329 = pneg %p156
        $region58: #{tpu_custom_call.1} parent=39 // pred_check_branch
          %331 = sbr.rel (%p329) target = $region60
        $region59: #{tpu_custom_call.1} parent=39 // pred_region
          %332 = dma.done [#allocation10], 16
        $region60: #{tpu_custom_call.1} parent=39 // pred_fallthru
          _
        %s333 = sand.u32 %s48, 1
        %s334 = scalar_lea.sflag [#allocation4], %s333
        %s335 = sand.u32 %s48, 1
        %s336 = smul.addr %s335, 128
        %s337 = scalar_lea.vmem [#allocation3], %s336
        %p338 = pneg %p61
        %p339 = pneg %p58
        %s340 = sand.u32 %s26, 1
        %s341 = scalar_lea.sflag [#allocation7], %s340
        %s342 = sand.u32 %s80, 1
        %s343 = smul.addr %s342, 32
        %s344 = scalar_lea.vmem [#allocation6], %s343
        %p345 = pneg %p93
        %p346 = pneg %p90
        %p347 = pneg %p114
        %p348 = pneg %p111
        %p349 = pneg %p135
        %p350 = pneg %p132
        %p351 = pneg %p156
        %p352 = pneg %p153
        %p353 = pneg %p184
        %p354 = pneg %p181
        %s355 = sand.u32 %s171, 1
        %s356 = scalar_lea.sflag [#allocation5], %s355
        %s357 = sand.u32 %s171, 1
        %s358 = smul.addr %s357, 128
        %s359 = scalar_lea.vmem [#allocation12], %s358
        %s360 = smul.u32 8, %s31
        %s361 = ssub.s32 10, %s360
        %p362 = scmp.lt.s32.totalorder %s361, 8
        %s363 = scalar_select %p362, %s361, 8
        %s364 = smul.u32 128, %s363
        %s365 = smul.u32 %s364, 2
        %s366 = sadd.s32 %s31, 1
        %s367 = smul.u32 %s366, 4
        %s368 = smul.u32 2, %s367
        %s369 = smul.u32 8, %s31
        %v371 = vld [vmem:[%s307] sm:$0xff]
        %v372 = vld [vmem:[%s307 + $0x8] sm:$0x3]
        %v373 = vld [vmem:[%s307 + $0x10] sm:$0xff]
        %v374 = vld [vmem:[%s307 + $0x18] sm:$0x3]
        %v375 = vld [vmem:[%s307 + $0x20] sm:$0xff]
        %v376 = vld [vmem:[%s307 + $0x28] sm:$0x3]
        %v377 = vld [vmem:[%s307 + $0x30] sm:$0xff]
        %v378 = vld [vmem:[%s307 + $0x38] sm:$0x3]
        %v379 = vld [vmem:[%s307 + $0x40] sm:$0xff]
        %v380 = vld [vmem:[%s307 + $0x48] sm:$0x3]
        %v381 = vld [vmem:[%s307 + $0x50] sm:$0xff]
        %v382 = vld [vmem:[%s307 + $0x58] sm:$0x3]
        %v383 = vld [vmem:[%s307 + $0x60] sm:$0xff]
        %v384 = vld [vmem:[%s307 + $0x68] sm:$0x3]
        %v385 = vld [vmem:[%s307 + $0x70] sm:$0xff]
        %v386 = vld [vmem:[%s307 + $0x78] sm:$0x3]
        %vm387 = vcmask 64512
        %388 = vst.msk [vmem:[#allocation2] sm:$0xff] %vm387, %v371
        %vm389 = vcmask 58368
        %390 = vst.msk [vmem:[#allocation2 + $0x8] sm:$0x3] %vm389, %v372
        %391 = vst.msk [vmem:[#allocation2 + $0x10] sm:$0xff] %vm387, %v373
        %392 = vst.msk [vmem:[#allocation2 + $0x18] sm:$0x3] %vm389, %v374
        %393 = vst.msk [vmem:[#allocation2 + $0x20] sm:$0xff] %vm387, %v375
        %394 = vst.msk [vmem:[#allocation2 + $0x28] sm:$0x3] %vm389, %v376
        %395 = vst.msk [vmem:[#allocation2 + $0x30] sm:$0xff] %vm387, %v377
        %396 = vst.msk [vmem:[#allocation2 + $0x38] sm:$0x3] %vm389, %v378
        %397 = vst.msk [vmem:[#allocation2 + $0x40] sm:$0xff] %vm387, %v379
        %398 = vst.msk [vmem:[#allocation2 + $0x48] sm:$0x3] %vm389, %v380
        %399 = vst.msk [vmem:[#allocation2 + $0x50] sm:$0xff] %vm387, %v381
        %400 = vst.msk [vmem:[#allocation2 + $0x58] sm:$0x3] %vm389, %v382
        %401 = vst.msk [vmem:[#allocation2 + $0x60] sm:$0xff] %vm387, %v383
        %402 = vst.msk [vmem:[#allocation2 + $0x68] sm:$0x3] %vm389, %v384
        %403 = vst.msk [vmem:[#allocation2 + $0x70] sm:$0xff] %vm387, %v385
        %404 = vst.msk [vmem:[#allocation2 + $0x78] sm:$0x3] %vm389, %v386
        %v405 = vld [vmem:[%s316] sm:$0xff]
        %v406 = vld [vmem:[%s316 + $0x8] sm:$0x3]
        %v407 = vld [vmem:[%s316 + $0x10] sm:$0xff]
        %v408 = vld [vmem:[%s316 + $0x18] sm:$0x3]
        %s409 = scalar_lea.vmem [#allocation2], 128
        %410 = vst.msk [vmem:[%s409] sm:$0xff] %vm387, %v405
        %411 = vst.msk [vmem:[%s409 + $0x8] sm:$0x3] %vm389, %v406
        %412 = vst.msk [vmem:[%s409 + $0x10] sm:$0xff] %vm387, %v407
        %413 = vst.msk [vmem:[%s409 + $0x18] sm:$0x3] %vm389, %v408
        %v414 = vld [vmem:[#allocation2] sm:$0xff]
        %v415 = vld [vmem:[#allocation2 + $0x10] sm:$0xff]
        %v416 = vld [vmem:[#allocation2 + $0x20] sm:$0xff]
        %v417 = vld [vmem:[#allocation2 + $0x30] sm:$0xff]
        %v418 = vld [vmem:[#allocation2 + $0x40] sm:$0xff]
        %v419 = vld [vmem:[#allocation2 + $0x50] sm:$0xff]
        %v420 = vld [vmem:[#allocation2 + $0x60] sm:$0xff]
        %v421 = vld [vmem:[#allocation2 + $0x70] sm:$0xff]
        %v422 = vpack.c.bf16 %v414, %v414
        %v423 = vpack.c.bf16 %v415, %v415
        %v424 = vpack.c.bf16 %v416, %v416
        %v425 = vpack.c.bf16 %v417, %v417
        %v426 = vpack.c.bf16 %v418, %v418
        %v427 = vpack.c.bf16 %v419, %v419
        %v428 = vpack.c.bf16 %v420, %v420
        %v429 = vpack.c.bf16 %v421, %v421
        %s430 = scalar_lea.vmem [#allocation8], 60
        %v431 = vld [vmem:[%s430] sm:$0xf]
        %v432 = vld [vmem:[#allocation2 + $0x1] sm:$0xff]
        %v433 = vld [vmem:[#allocation2 + $0x11] sm:$0xff]
        %v434 = vld [vmem:[#allocation2 + $0x21] sm:$0xff]
        %v435 = vld [vmem:[#allocation2 + $0x31] sm:$0xff]
        %v436 = vld [vmem:[#allocation2 + $0x41] sm:$0xff]
        %v437 = vld [vmem:[#allocation2 + $0x51] sm:$0xff]
        %v438 = vld [vmem:[#allocation2 + $0x61] sm:$0xff]
        %v439 = vld [vmem:[#allocation2 + $0x71] sm:$0xff]
        %v440 = vpack.c.bf16 %v432, %v432
        %v441 = vpack.c.bf16 %v433, %v433
        %v442 = vpack.c.bf16 %v434, %v434
        %v443 = vpack.c.bf16 %v435, %v435
        %v444 = vpack.c.bf16 %v436, %v436
        %v445 = vpack.c.bf16 %v437, %v437
        %v446 = vpack.c.bf16 %v438, %v438
        %v447 = vpack.c.bf16 %v439, %v439
        %s448 = scalar_lea.vmem [#allocation8], 52
        %v449 = vld [vmem:[%s448] sm:$0xf]
        %v458 = vunpack.c.l.b16 %v440
        %v459 = vunpack.c.l.b16 %v441
        %v460 = vunpack.c.l.b16 %v442
        %v461 = vunpack.c.l.b16 %v443
        %v462 = vunpack.c.l.b16 %v444
        %v463 = vunpack.c.l.b16 %v445
        %v464 = vunpack.c.l.b16 %v446
        %v465 = vunpack.c.l.b16 %v447
        %v466 = vpack.c.b16 %v459, %v458
        %v467 = vpack.c.b16 %v461, %v460
        %v468 = vpack.c.b16 %v463, %v462
        %v469 = vpack.c.b16 %v465, %v464
        %v471 = vsel %vm387, %v466, 0
        %v474 = vsel %vm387, %v467, 0
        %v477 = vsel %vm387, %v468, 0
        %v480 = vsel %vm387, %v469, 0
        %vm482 = vcmask 1043456
        %v484 = vsel %vm482, %v449, 0
        %486 = vmatprep.subr.bf16.mxu0 0
        %487 = vmatpush1.bf16.msra.mxu0 %v484
        %488 = vmatprep.subr.bf16.mxu0 0
        %489 = vmatpush1.bf16.msra.mxu0 0
        %490 = vmatprep.subr.bf16.mxu0 0
        %491 = vmatpush1.bf16.msra.mxu0 0
        %492 = vmatprep.subr.bf16.mxu0 0
        %493 = vmatpush1.bf16.msra.mxu0 0
        %494 = vmatprep.subr.bf16.mxu0 0
        %495 = vmatpush1.bf16.msra.mxu0 0
        %496 = vmatprep.subr.bf16.mxu0 0
        %497 = vmatpush1.bf16.msra.mxu0 0
        %498 = vmatprep.subr.bf16.mxu0 0
        %499 = vmatpush1.bf16.msra.mxu0 0
        %500 = vmatprep.subr.bf16.mxu0 0
        %501 = vmatpush1.bf16.msra.mxu0 0
        %502 = vmatprep.subr.bf16.mxu0 0
        %503 = vmatpush1.bf16.msra.mxu0 0
        %504 = vmatprep.subr.bf16.mxu0 0
        %505 = vmatpush1.bf16.msra.mxu0 0
        %506 = vmatprep.subr.bf16.mxu0 0
        %507 = vmatpush1.bf16.msra.mxu0 0
        %508 = vmatprep.subr.bf16.mxu0 0
        %509 = vmatpush1.bf16.msra.mxu0 0
        %510 = vmatprep.subr.bf16.mxu0 0
        %511 = vmatpush1.bf16.msra.mxu0 0
        %512 = vmatprep.subr.bf16.mxu0 0
        %513 = vmatpush1.bf16.msra.mxu0 0
        %514 = vmatprep.subr.bf16.mxu0 0
        %515 = vmatpush1.bf16.msra.mxu0 0
        %516 = vmatprep.subr.bf16.mxu0 0
        %517 = vmatpush1.bf16.msra.mxu0 0
        %518 = vmatprep.mubr.bf16.mxu0 0
        %519 = vmatmul.mubr.bf16.gmra.mrb[0].mxu0 %v471
        %v520 = vpop.f32.mrb[0].mxu0
        %v521 = vadd.f32 0.0, %v520
        %v522 = vpop.f32.mrb[0].mxu0
        %v523 = vpop.f32.mrb[0].mxu0
        %v524 = vadd.f32 0.0, %v523
        %v525 = vpop.f32.mrb[0].mxu0
        %526 = vmatprep.mubr.bf16.mxu0 0
        %527 = vmatmul.mubr.bf16.gmra.mrb[0].mxu0 %v474
        %v528 = vpop.f32.mrb[0].mxu0
        %v529 = vadd.f32 0.0, %v528
        %v530 = vpop.f32.mrb[0].mxu0
        %v531 = vpop.f32.mrb[0].mxu0
        %v532 = vadd.f32 0.0, %v531
        %v533 = vpop.f32.mrb[0].mxu0
        %534 = vmatprep.mubr.bf16.mxu0 0
        %535 = vmatmul.mubr.bf16.gmra.mrb[0].mxu0 %v477
        %v536 = vpop.f32.mrb[0].mxu0
        %v537 = vadd.f32 0.0, %v536
        %v538 = vpop.f32.mrb[0].mxu0
        %v539 = vpop.f32.mrb[0].mxu0
        %v540 = vadd.f32 0.0, %v539
        %v541 = vpop.f32.mrb[0].mxu0
        %542 = vmatprep.mubr.bf16.mxu0 0
        %543 = vmatmul.mubr.bf16.gmra.mrb[0].mxu0 %v480
        %v544 = vpop.f32.mrb[0].mxu0
        %v545 = vadd.f32 0.0, %v544
        %v546 = vpop.f32.mrb[0].mxu0
        %v547 = vpop.f32.mrb[0].mxu0
        %v548 = vadd.f32 0.0, %v547
        %v549 = vpop.f32.mrb[0].mxu0
        %550 = vdwg.mxu0
        %v559 = vunpack.c.l.b16 %v422
        %v560 = vunpack.c.l.b16 %v423
        %v561 = vunpack.c.l.b16 %v424
        %v562 = vunpack.c.l.b16 %v425
        %v563 = vunpack.c.l.b16 %v426
        %v564 = vunpack.c.l.b16 %v427
        %v565 = vunpack.c.l.b16 %v428
        %v566 = vunpack.c.l.b16 %v429
        %v567 = vpack.c.b16 %v560, %v559
        %v568 = vpack.c.b16 %v562, %v561
        %v569 = vpack.c.b16 %v564, %v563
        %v570 = vpack.c.b16 %v566, %v565
        %v572 = vsel %vm387, %v567, 0
        %v575 = vsel %vm387, %v568, 0
        %v578 = vsel %vm387, %v569, 0
        %v581 = vsel %vm387, %v570, 0
        %v584 = vsel %vm482, %v431, 0
        %586 = vmatprep.subr.bf16.mxu0 0
        %587 = vmatpush1.bf16.msra.mxu0 %v584
        %588 = vmatprep.subr.bf16.mxu0 0
        %589 = vmatpush1.bf16.msra.mxu0 0
        %590 = vmatprep.subr.bf16.mxu0 0
        %591 = vmatpush1.bf16.msra.mxu0 0
        %592 = vmatprep.subr.bf16.mxu0 0
        %593 = vmatpush1.bf16.msra.mxu0 0
        %594 = vmatprep.subr.bf16.mxu0 0
        %595 = vmatpush1.bf16.msra.mxu0 0
        %596 = vmatprep.subr.bf16.mxu0 0
        %597 = vmatpush1.bf16.msra.mxu0 0
        %598 = vmatprep.subr.bf16.mxu0 0
        %599 = vmatpush1.bf16.msra.mxu0 0
        %600 = vmatprep.subr.bf16.mxu0 0
        %601 = vmatpush1.bf16.msra.mxu0 0
        %602 = vmatprep.subr.bf16.mxu0 0
        %603 = vmatpush1.bf16.msra.mxu0 0
        %604 = vmatprep.subr.bf16.mxu0 0
        %605 = vmatpush1.bf16.msra.mxu0 0
        %606 = vmatprep.subr.bf16.mxu0 0
        %607 = vmatpush1.bf16.msra.mxu0 0
        %608 = vmatprep.subr.bf16.mxu0 0
        %609 = vmatpush1.bf16.msra.mxu0 0
        %610 = vmatprep.subr.bf16.mxu0 0
        %611 = vmatpush1.bf16.msra.mxu0 0
        %612 = vmatprep.subr.bf16.mxu0 0
        %613 = vmatpush1.bf16.msra.mxu0 0
        %614 = vmatprep.subr.bf16.mxu0 0
        %615 = vmatpush1.bf16.msra.mxu0 0
        %616 = vmatprep.subr.bf16.mxu0 0
        %617 = vmatpush1.bf16.msra.mxu0 0
        %618 = vmatprep.mubr.bf16.mxu0 0
        %619 = vmatmul.mubr.bf16.gmra.mrb[0].mxu0 %v572
        %v620 = vpop.f32.mrb[0].mxu0
        %v621 = vadd.f32 %v521, %v620
        %v622 = vpop.f32.mrb[0].mxu0
        %v623 = vpop.f32.mrb[0].mxu0
        %v624 = vadd.f32 %v524, %v623
        %v625 = vpop.f32.mrb[0].mxu0
        %626 = vmatprep.mubr.bf16.mxu0 0
        %627 = vmatmul.mubr.bf16.gmra.mrb[0].mxu0 %v575
        %v628 = vpop.f32.mrb[0].mxu0
        %v629 = vadd.f32 %v529, %v628
        %v630 = vpop.f32.mrb[0].mxu0
        %v631 = vpop.f32.mrb[0].mxu0
        %v632 = vadd.f32 %v532, %v631
        %v633 = vpop.f32.mrb[0].mxu0
        %634 = vmatprep.mubr.bf16.mxu0 0
        %635 = vmatmul.mubr.bf16.gmra.mrb[0].mxu0 %v578
        %v636 = vpop.f32.mrb[0].mxu0
        %v637 = vadd.f32 %v537, %v636
        %v638 = vpop.f32.mrb[0].mxu0
        %v639 = vpop.f32.mrb[0].mxu0
        %v640 = vadd.f32 %v540, %v639
        %v641 = vpop.f32.mrb[0].mxu0
        %642 = vmatprep.mubr.bf16.mxu0 0
        %643 = vmatmul.mubr.bf16.gmra.mrb[0].mxu0 %v581
        %v644 = vpop.f32.mrb[0].mxu0
        %v645 = vadd.f32 %v545, %v644
        %v646 = vpop.f32.mrb[0].mxu0
        %v647 = vpop.f32.mrb[0].mxu0
        %v648 = vadd.f32 %v548, %v647
        %v649 = vpop.f32.mrb[0].mxu0
        %650 = vdwg.mxu0
        %s651 = scalar_lea.vmem [#allocation2], 16
        %v652 = vld [vmem:[%s651] sm:$0xff]
        %v653 = vld [vmem:[%s651 + $0x10] sm:$0xff]
        %v654 = vld [vmem:[%s651 + $0x20] sm:$0xff]
        %v655 = vld [vmem:[%s651 + $0x30] sm:$0xff]
        %v656 = vld [vmem:[%s651 + $0x40] sm:$0xff]
        %v657 = vld [vmem:[%s651 + $0x50] sm:$0xff]
        %v658 = vld [vmem:[%s651 + $0x60] sm:$0xff]
        %v659 = vld [vmem:[%s651 + $0x70] sm:$0xff]
        %v660 = vpack.c.bf16 %v652, %v652
        %v661 = vpack.c.bf16 %v653, %v653
        %v662 = vpack.c.bf16 %v654, %v654
        %v663 = vpack.c.bf16 %v655, %v655
        %v664 = vpack.c.bf16 %v656, %v656
        %v665 = vpack.c.bf16 %v657, %v657
        %v666 = vpack.c.bf16 %v658, %v658
        %v667 = vpack.c.bf16 %v659, %v659
        %s668 = scalar_lea.vmem [#allocation8], 28
        %v669 = vld [vmem:[%s668] sm:$0xf]
        %v678 = vunpack.c.l.b16 %v660
        %v679 = vunpack.c.l.b16 %v661
        %v680 = vunpack.c.l.b16 %v662
        %v681 = vunpack.c.l.b16 %v663
        %v682 = vunpack.c.l.b16 %v664
        %v683 = vunpack.c.l.b16 %v665
        %v684 = vunpack.c.l.b16 %v666
        %v685 = vunpack.c.l.b16 %v667
        %v686 = vpack.c.b16 %v679, %v678
        %v687 = vpack.c.b16 %v681, %v680
        %v688 = vpack.c.b16 %v683, %v682
        %v689 = vpack.c.b16 %v685, %v684
        %v691 = vsel %vm387, %v686, 0
        %v694 = vsel %vm387, %v687, 0
        %v697 = vsel %vm387, %v688, 0
        %v700 = vsel %vm387, %v689, 0
        %v703 = vsel %vm482, %v669, 0
        %705 = vmatprep.subr.bf16.mxu0 0
        %706 = vmatpush1.bf16.msra.mxu0 %v703
        %707 = vmatprep.subr.bf16.mxu0 0
        %708 = vmatpush1.bf16.msra.mxu0 0
        %709 = vmatprep.subr.bf16.mxu0 0
        %710 = vmatpush1.bf16.msra.mxu0 0
        %711 = vmatprep.subr.bf16.mxu0 0
        %712 = vmatpush1.bf16.msra.mxu0 0
        %713 = vmatprep.subr.bf16.mxu0 0
        %714 = vmatpush1.bf16.msra.mxu0 0
        %715 = vmatprep.subr.bf16.mxu0 0
        %716 = vmatpush1.bf16.msra.mxu0 0
        %717 = vmatprep.subr.bf16.mxu0 0
        %718 = vmatpush1.bf16.msra.mxu0 0
        %719 = vmatprep.subr.bf16.mxu0 0
        %720 = vmatpush1.bf16.msra.mxu0 0
        %721 = vmatprep.subr.bf16.mxu0 0
        %722 = vmatpush1.bf16.msra.mxu0 0
        %723 = vmatprep.subr.bf16.mxu0 0
        %724 = vmatpush1.bf16.msra.mxu0 0
        %725 = vmatprep.subr.bf16.mxu0 0
        %726 = vmatpush1.bf16.msra.mxu0 0
        %727 = vmatprep.subr.bf16.mxu0 0
        %728 = vmatpush1.bf16.msra.mxu0 0
        %729 = vmatprep.subr.bf16.mxu0 0
        %730 = vmatpush1.bf16.msra.mxu0 0
        %731 = vmatprep.subr.bf16.mxu0 0
        %732 = vmatpush1.bf16.msra.mxu0 0
        %733 = vmatprep.subr.bf16.mxu0 0
        %734 = vmatpush1.bf16.msra.mxu0 0
        %735 = vmatprep.subr.bf16.mxu0 0
        %736 = vmatpush1.bf16.msra.mxu0 0
        %737 = vmatprep.mubr.bf16.mxu0 0
        %738 = vmatmul.mubr.bf16.gmra.mrb[0].mxu0 %v691
        %v739 = vpop.f32.mrb[0].mxu0
        %v740 = vadd.f32 0.0, %v739
        %v741 = vpop.f32.mrb[0].mxu0
        %v742 = vpop.f32.mrb[0].mxu0
        %v743 = vadd.f32 0.0, %v742
        %v744 = vpop.f32.mrb[0].mxu0
        %745 = vmatprep.mubr.bf16.mxu0 0
        %746 = vmatmul.mubr.bf16.gmra.mrb[0].mxu0 %v694
        %v747 = vpop.f32.mrb[0].mxu0
        %v748 = vadd.f32 0.0, %v747
        %v749 = vpop.f32.mrb[0].mxu0
        %v750 = vpop.f32.mrb[0].mxu0
        %v751 = vadd.f32 0.0, %v750
        %v752 = vpop.f32.mrb[0].mxu0
        %753 = vmatprep.mubr.bf16.mxu0 0
        %754 = vmatmul.mubr.bf16.gmra.mrb[0].mxu0 %v697
        %v755 = vpop.f32.mrb[0].mxu0
        %v756 = vadd.f32 0.0, %v755
        %v757 = vpop.f32.mrb[0].mxu0
        %v758 = vpop.f32.mrb[0].mxu0
        %v759 = vadd.f32 0.0, %v758
        %v760 = vpop.f32.mrb[0].mxu0
        %761 = vmatprep.mubr.bf16.mxu0 0
        %762 = vmatmul.mubr.bf16.gmra.mrb[0].mxu0 %v700
        %v763 = vpop.f32.mrb[0].mxu0
        %v764 = vadd.f32 0.0, %v763
        %v765 = vpop.f32.mrb[0].mxu0
        %v766 = vpop.f32.mrb[0].mxu0
        %v767 = vadd.f32 0.0, %v766
        %v768 = vpop.f32.mrb[0].mxu0
        %769 = vdwg.mxu0
        %v770 = vadd.f32 %v621, %v740
        %v771 = vadd.f32 %v624, %v743
        %v772 = vadd.f32 %v629, %v748
        %v773 = vadd.f32 %v632, %v751
        %v774 = vadd.f32 %v637, %v756
        %v775 = vadd.f32 %v640, %v759
        %v776 = vadd.f32 %v645, %v764
        %v777 = vadd.f32 %v648, %v767
        %v778 = vld [vmem:[%s651 + $0x1] sm:$0xff]
        %v779 = vld [vmem:[%s651 + $0x11] sm:$0xff]
        %v780 = vld [vmem:[%s651 + $0x21] sm:$0xff]
        %v781 = vld [vmem:[%s651 + $0x31] sm:$0xff]
        %v782 = vld [vmem:[%s651 + $0x41] sm:$0xff]
        %v783 = vld [vmem:[%s651 + $0x51] sm:$0xff]
        %v784 = vld [vmem:[%s651 + $0x61] sm:$0xff]
        %v785 = vld [vmem:[%s651 + $0x71] sm:$0xff]
        %v786 = vpack.c.bf16 %v778, %v778
        %v787 = vpack.c.bf16 %v779, %v779
        %v788 = vpack.c.bf16 %v780, %v780
        %v789 = vpack.c.bf16 %v781, %v781
        %v790 = vpack.c.bf16 %v782, %v782
        %v791 = vpack.c.bf16 %v783, %v783
        %v792 = vpack.c.bf16 %v784, %v784
        %v793 = vpack.c.bf16 %v785, %v785
        %s794 = scalar_lea.vmem [#allocation8], 20
        %v795 = vld [vmem:[%s794] sm:$0xf]
        %v804 = vunpack.c.l.b16 %v786
        %v805 = vunpack.c.l.b16 %v787
        %v806 = vunpack.c.l.b16 %v788
        %v807 = vunpack.c.l.b16 %v789
        %v808 = vunpack.c.l.b16 %v790
        %v809 = vunpack.c.l.b16 %v791
        %v810 = vunpack.c.l.b16 %v792
        %v811 = vunpack.c.l.b16 %v793
        %v812 = vpack.c.b16 %v805, %v804
        %v813 = vpack.c.b16 %v807, %v806
        %v814 = vpack.c.b16 %v809, %v808
        %v815 = vpack.c.b16 %v811, %v810
        %v817 = vsel %vm387, %v812, 0
        %v820 = vsel %vm387, %v813, 0
        %v823 = vsel %vm387, %v814, 0
        %v826 = vsel %vm387, %v815, 0
        %v829 = vsel %vm482, %v795, 0
        %831 = vmatprep.subr.bf16.mxu0 0
        %832 = vmatpush1.bf16.msra.mxu0 %v829
        %833 = vmatprep.subr.bf16.mxu0 0
        %834 = vmatpush1.bf16.msra.mxu0 0
        %835 = vmatprep.subr.bf16.mxu0 0
        %836 = vmatpush1.bf16.msra.mxu0 0
        %837 = vmatprep.subr.bf16.mxu0 0
        %838 = vmatpush1.bf16.msra.mxu0 0
        %839 = vmatprep.subr.bf16.mxu0 0
        %840 = vmatpush1.bf16.msra.mxu0 0
        %841 = vmatprep.subr.bf16.mxu0 0
        %842 = vmatpush1.bf16.msra.mxu0 0
        %843 = vmatprep.subr.bf16.mxu0 0
        %844 = vmatpush1.bf16.msra.mxu0 0
        %845 = vmatprep.subr.bf16.mxu0 0
        %846 = vmatpush1.bf16.msra.mxu0 0
        %847 = vmatprep.subr.bf16.mxu0 0
        %848 = vmatpush1.bf16.msra.mxu0 0
        %849 = vmatprep.subr.bf16.mxu0 0
        %850 = vmatpush1.bf16.msra.mxu0 0
        %851 = vmatprep.subr.bf16.mxu0 0
        %852 = vmatpush1.bf16.msra.mxu0 0
        %853 = vmatprep.subr.bf16.mxu0 0
        %854 = vmatpush1.bf16.msra.mxu0 0
        %855 = vmatprep.subr.bf16.mxu0 0
        %856 = vmatpush1.bf16.msra.mxu0 0
        %857 = vmatprep.subr.bf16.mxu0 0
        %858 = vmatpush1.bf16.msra.mxu0 0
        %859 = vmatprep.subr.bf16.mxu0 0
        %860 = vmatpush1.bf16.msra.mxu0 0
        %861 = vmatprep.subr.bf16.mxu0 0
        %862 = vmatpush1.bf16.msra.mxu0 0
        %863 = vmatprep.mubr.bf16.mxu0 0
        %864 = vmatmul.mubr.bf16.gmra.mrb[0].mxu0 %v817
        %v865 = vpop.f32.mrb[0].mxu0
        %v866 = vadd.f32 0.0, %v865
        %v867 = vpop.f32.mrb[0].mxu0
        %v868 = vpop.f32.mrb[0].mxu0
        %v869 = vadd.f32 0.0, %v868
        %v870 = vpop.f32.mrb[0].mxu0
        %871 = vmatprep.mubr.bf16.mxu0 0
        %872 = vmatmul.mubr.bf16.gmra.mrb[0].mxu0 %v820
        %v873 = vpop.f32.mrb[0].mxu0
        %v874 = vadd.f32 0.0, %v873
        %v875 = vpop.f32.mrb[0].mxu0
        %v876 = vpop.f32.mrb[0].mxu0
        %v877 = vadd.f32 0.0, %v876
        %v878 = vpop.f32.mrb[0].mxu0
        %879 = vmatprep.mubr.bf16.mxu0 0
        %880 = vmatmul.mubr.bf16.gmra.mrb[0].mxu0 %v823
        %v881 = vpop.f32.mrb[0].mxu0
        %v882 = vadd.f32 0.0, %v881
        %v883 = vpop.f32.mrb[0].mxu0
        %v884 = vpop.f32.mrb[0].mxu0
        %v885 = vadd.f32 0.0, %v884
        %v886 = vpop.f32.mrb[0].mxu0
        %887 = vmatprep.mubr.bf16.mxu0 0
        %888 = vmatmul.mubr.bf16.gmra.mrb[0].mxu0 %v826
        %v889 = vpop.f32.mrb[0].mxu0
        %v890 = vadd.f32 0.0, %v889
        %v891 = vpop.f32.mrb[0].mxu0
        %v892 = vpop.f32.mrb[0].mxu0
        %v893 = vadd.f32 0.0, %v892
        %v894 = vpop.f32.mrb[0].mxu0
        %895 = vdwg.mxu0
        %v896 = vadd.f32 %v770, %v866
        %v897 = vadd.f32 %v771, %v869
        %v898 = vadd.f32 %v772, %v874
        %v899 = vadd.f32 %v773, %v877
        %v900 = vadd.f32 %v774, %v882
        %v901 = vadd.f32 %v775, %v885
        %v902 = vadd.f32 %v776, %v890
        %v903 = vadd.f32 %v777, %v893
        %v904 = vld [vmem:[#allocation9] sm:$0x1]
        %v906 = vlaneseq
        %v907 = vshrl.u32 %v906, 7
        %v908 = vsub.s32 0, %v907
        %v909 = vrot.slane %v904, %v908
        %v911 = vmul.f32 %v896, %v909
        %v912 = vmul.f32 %v897, %v909
        %v913 = vmul.f32 %v898, %v909
        %v914 = vmul.f32 %v899, %v909
        %v915 = vmul.f32 %v900, %v909
        %v916 = vmul.f32 %v901, %v909
        %v917 = vmul.f32 %v902, %v909
        %v918 = vmul.f32 %v903, %v909
        %v919 = vld [vmem:[#allocation11] sm:$0x1]
        %v921 = vlaneseq
        %v922 = vshrl.u32 %v921, 7
        %v923 = vsub.s32 0, %v922
        %v924 = vrot.slane %v919, %v923
        %v926 = vadd.f32 %v911, %v924
        %v927 = vadd.f32 %v912, %v924
        %v928 = vadd.f32 %v913, %v924
        %v929 = vadd.f32 %v914, %v924
        %v930 = vadd.f32 %v915, %v924
        %v931 = vadd.f32 %v916, %v924
        %v932 = vadd.f32 %v917, %v924
        %v933 = vadd.f32 %v918, %v924
        %v934 = vmax.f32 %v926, 0.0
        %v935 = vmax.f32 %v927, 0.0
        %v936 = vmax.f32 %v928, 0.0
        %v937 = vmax.f32 %v929, 0.0
        %v938 = vmax.f32 %v930, 0.0
        %v939 = vmax.f32 %v931, 0.0
        %v940 = vmax.f32 %v932, 0.0
        %v941 = vmax.f32 %v933, 0.0
        %vm942 = vcmask 130048
        %943 = vst.msk [vmem:[%s359] sm:$0xff] %vm942, %v934
        %944 = vst.msk [vmem:[%s359 + $0x10] sm:$0xff] %vm942, %v935
        %945 = vst.msk [vmem:[%s359 + $0x20] sm:$0xff] %vm942, %v936
        %946 = vst.msk [vmem:[%s359 + $0x30] sm:$0xff] %vm942, %v937
        %947 = vst.msk [vmem:[%s359 + $0x40] sm:$0xff] %vm942, %v938
        %948 = vst.msk [vmem:[%s359 + $0x50] sm:$0xff] %vm942, %v939
        %949 = vst.msk [vmem:[%s359 + $0x60] sm:$0xff] %vm942, %v940
        %950 = vst.msk [vmem:[%s359 + $0x70] sm:$0xff] %vm942, %v941
        %v951 = vld [vmem:[#allocation2 + $0x1] sm:$0xff]
        %v952 = vld [vmem:[#allocation2 + $0x11] sm:$0xff]
        %v953 = vld [vmem:[#allocation2 + $0x21] sm:$0xff]
        %v954 = vld [vmem:[#allocation2 + $0x31] sm:$0xff]
        %v955 = vld [vmem:[#allocation2 + $0x41] sm:$0xff]
        %v956 = vld [vmem:[#allocation2 + $0x51] sm:$0xff]
        %v957 = vld [vmem:[#allocation2 + $0x61] sm:$0xff]
        %v958 = vld [vmem:[#allocation2 + $0x71] sm:$0xff]
        %v959 = vpack.c.bf16 %v951, %v951
        %v960 = vpack.c.bf16 %v952, %v952
        %v961 = vpack.c.bf16 %v953, %v953
        %v962 = vpack.c.bf16 %v954, %v954
        %v963 = vpack.c.bf16 %v955, %v955
        %v964 = vpack.c.bf16 %v956, %v956
        %v965 = vpack.c.bf16 %v957, %v957
        %v966 = vpack.c.bf16 %v958, %v958
        %s967 = scalar_lea.vmem [#allocation8], 56
        %v968 = vld [vmem:[%s967] sm:$0xf]
        %v969 = vld [vmem:[#allocation2 + $0x2] sm:$0xff]
        %v970 = vld [vmem:[#allocation2 + $0x12] sm:$0xff]
        %v971 = vld [vmem:[#allocation2 + $0x22] sm:$0xff]
        %v972 = vld [vmem:[#allocation2 + $0x32] sm:$0xff]
        %v973 = vld [vmem:[#allocation2 + $0x42] sm:$0xff]
        %v974 = vld [vmem:[#allocation2 + $0x52] sm:$0xff]
        %v975 = vld [vmem:[#allocation2 + $0x62] sm:$0xff]
        %v976 = vld [vmem:[#allocation2 + $0x72] sm:$0xff]
        %v977 = vpack.c.bf16 %v969, %v969
        %v978 = vpack.c.bf16 %v970, %v970
        %v979 = vpack.c.bf16 %v971, %v971
        %v980 = vpack.c.bf16 %v972, %v972
        %v981 = vpack.c.bf16 %v973, %v973
        %v982 = vpack.c.bf16 %v974, %v974
        %v983 = vpack.c.bf16 %v975, %v975
        %v984 = vpack.c.bf16 %v976, %v976
        %s985 = scalar_lea.vmem [#allocation8], 48
        %v986 = vld [vmem:[%s985] sm:$0xf]
        %v995 = vunpack.c.l.b16 %v977
        %v996 = vunpack.c.l.b16 %v978
        %v997 = vunpack.c.l.b16 %v979
        %v998 = vunpack.c.l.b16 %v980
        %v999 = vunpack.c.l.b16 %v981
        %v1000 = vunpack.c.l.b16 %v982
        %v1001 = vunpack.c.l.b16 %v983
        %v1002 = vunpack.c.l.b16 %v984
        %v1003 = vpack.c.b16 %v996, %v995
        %v1004 = vpack.c.b16 %v998, %v997
        %v1005 = vpack.c.b16 %v1000, %v999
        %v1006 = vpack.c.b16 %v1002, %v1001
        %v1008 = vsel %vm387, %v1003, 0
        %v1011 = vsel %vm387, %v1004, 0
        %v1014 = vsel %vm387, %v1005, 0
        %v1017 = vsel %vm387, %v1006, 0
        %v1020 = vsel %vm482, %v986, 0
        %1022 = vmatprep.subr.bf16.mxu0 0
        %1023 = vmatpush1.bf16.msra.mxu0 %v1020
        %1024 = vmatprep.subr.bf16.mxu0 0
        %1025 = vmatpush1.bf16.msra.mxu0 0
        %1026 = vmatprep.subr.bf16.mxu0 0
        %1027 = vmatpush1.bf16.msra.mxu0 0
        %1028 = vmatprep.subr.bf16.mxu0 0
        %1029 = vmatpush1.bf16.msra.mxu0 0
        %1030 = vmatprep.subr.bf16.mxu0 0
        %1031 = vmatpush1.bf16.msra.mxu0 0
        %1032 = vmatprep.subr.bf16.mxu0 0
        %1033 = vmatpush1.bf16.msra.mxu0 0
        %1034 = vmatprep.subr.bf16.mxu0 0
        %1035 = vmatpush1.bf16.msra.mxu0 0
        %1036 = vmatprep.subr.bf16.mxu0 0
        %1037 = vmatpush1.bf16.msra.mxu0 0
        %1038 = vmatprep.subr.bf16.mxu0 0
        %1039 = vmatpush1.bf16.msra.mxu0 0
        %1040 = vmatprep.subr.bf16.mxu0 0
        %1041 = vmatpush1.bf16.msra.mxu0 0
        %1042 = vmatprep.subr.bf16.mxu0 0
        %1043 = vmatpush1.bf16.msra.mxu0 0
        %1044 = vmatprep.subr.bf16.mxu0 0
        %1045 = vmatpush1.bf16.msra.mxu0 0
        %1046 = vmatprep.subr.bf16.mxu0 0
        %1047 = vmatpush1.bf16.msra.mxu0 0
        %1048 = vmatprep.subr.bf16.mxu0 0
        %1049 = vmatpush1.bf16.msra.mxu0 0
        %1050 = vmatprep.subr.bf16.mxu0 0
        %1051 = vmatpush1.bf16.msra.mxu0 0
        %1052 = vmatprep.subr.bf16.mxu0 0
        %1053 = vmatpush1.bf16.msra.mxu0 0
        %1054 = vmatprep.mubr.bf16.mxu0 0
        %1055 = vmatmul.mubr.bf16.gmra.mrb[0].mxu0 %v1008
        %v1056 = vpop.f32.mrb[0].mxu0
        %v1057 = vadd.f32 0.0, %v1056
        %v1058 = vpop.f32.mrb[0].mxu0
        %v1059 = vpop.f32.mrb[0].mxu0
        %v1060 = vadd.f32 0.0, %v1059
        %v1061 = vpop.f32.mrb[0].mxu0
        %1062 = vmatprep.mubr.bf16.mxu0 0
        %1063 = vmatmul.mubr.bf16.gmra.mrb[0].mxu0 %v1011
        %v1064 = vpop.f32.mrb[0].mxu0
        %v1065 = vadd.f32 0.0, %v1064
        %v1066 = vpop.f32.mrb[0].mxu0
        %v1067 = vpop.f32.mrb[0].mxu0
        %v1068 = vadd.f32 0.0, %v1067
        %v1069 = vpop.f32.mrb[0].mxu0
        %1070 = vmatprep.mubr.bf16.mxu0 0
        %1071 = vmatmul.mubr.bf16.gmra.mrb[0].mxu0 %v1014
        %v1072 = vpop.f32.mrb[0].mxu0
        %v1073 = vadd.f32 0.0, %v1072
        %v1074 = vpop.f32.mrb[0].mxu0
        %v1075 = vpop.f32.mrb[0].mxu0
        %v1076 = vadd.f32 0.0, %v1075
        %v1077 = vpop.f32.mrb[0].mxu0
        %1078 = vmatprep.mubr.bf16.mxu0 0
        %1079 = vmatmul.mubr.bf16.gmra.mrb[0].mxu0 %v1017
        %v1080 = vpop.f32.mrb[0].mxu0
        %v1081 = vadd.f32 0.0, %v1080
        %v1082 = vpop.f32.mrb[0].mxu0
        %v1083 = vpop.f32.mrb[0].mxu0
        %v1084 = vadd.f32 0.0, %v1083
        %v1085 = vpop.f32.mrb[0].mxu0
        %1086 = vdwg.mxu0
        %v1095 = vunpack.c.l.b16 %v959
        %v1096 = vunpack.c.l.b16 %v960
        %v1097 = vunpack.c.l.b16 %v961
        %v1098 = vunpack.c.l.b16 %v962
        %v1099 = vunpack.c.l.b16 %v963
        %v1100 = vunpack.c.l.b16 %v964
        %v1101 = vunpack.c.l.b16 %v965
        %v1102 = vunpack.c.l.b16 %v966
        %v1103 = vpack.c.b16 %v1096, %v1095
        %v1104 = vpack.c.b16 %v1098, %v1097
        %v1105 = vpack.c.b16 %v1100, %v1099
        %v1106 = vpack.c.b16 %v1102, %v1101
        %v1108 = vsel %vm387, %v1103, 0
        %v1111 = vsel %vm387, %v1104, 0
        %v1114 = vsel %vm387, %v1105, 0
        %v1117 = vsel %vm387, %v1106, 0
        %v1120 = vsel %vm482, %v968, 0
        %1122 = vmatprep.subr.bf16.mxu0 0
        %1123 = vmatpush1.bf16.msra.mxu0 %v1120
        %1124 = vmatprep.subr.bf16.mxu0 0
        %1125 = vmatpush1.bf16.msra.mxu0 0
        %1126 = vmatprep.subr.bf16.mxu0 0
        %1127 = vmatpush1.bf16.msra.mxu0 0
        %1128 = vmatprep.subr.bf16.mxu0 0
        %1129 = vmatpush1.bf16.msra.mxu0 0
        %1130 = vmatprep.subr.bf16.mxu0 0
        %1131 = vmatpush1.bf16.msra.mxu0 0
        %1132 = vmatprep.subr.bf16.mxu0 0
        %1133 = vmatpush1.bf16.msra.mxu0 0
        %1134 = vmatprep.subr.bf16.mxu0 0
        %1135 = vmatpush1.bf16.msra.mxu0 0
        %1136 = vmatprep.subr.bf16.mxu0 0
        %1137 = vmatpush1.bf16.msra.mxu0 0
        %1138 = vmatprep.subr.bf16.mxu0 0
        %1139 = vmatpush1.bf16.msra.mxu0 0
        %1140 = vmatprep.subr.bf16.mxu0 0
        %1141 = vmatpush1.bf16.msra.mxu0 0
        %1142 = vmatprep.subr.bf16.mxu0 0
        %1143 = vmatpush1.bf16.msra.mxu0 0
        %1144 = vmatprep.subr.bf16.mxu0 0
        %1145 = vmatpush1.bf16.msra.mxu0 0
        %1146 = vmatprep.subr.bf16.mxu0 0
        %1147 = vmatpush1.bf16.msra.mxu0 0
        %1148 = vmatprep.subr.bf16.mxu0 0
        %1149 = vmatpush1.bf16.msra.mxu0 0
        %1150 = vmatprep.subr.bf16.mxu0 0
        %1151 = vmatpush1.bf16.msra.mxu0 0
        %1152 = vmatprep.subr.bf16.mxu0 0
        %1153 = vmatpush1.bf16.msra.mxu0 0
        %1154 = vmatprep.mubr.bf16.mxu0 0
        %1155 = vmatmul.mubr.bf16.gmra.mrb[0].mxu0 %v1108
        %v1156 = vpop.f32.mrb[0].mxu0
        %v1157 = vadd.f32 %v1057, %v1156
        %v1158 = vpop.f32.mrb[0].mxu0
        %v1159 = vpop.f32.mrb[0].mxu0
        %v1160 = vadd.f32 %v1060, %v1159
        %v1161 = vpop.f32.mrb[0].mxu0
        %1162 = vmatprep.mubr.bf16.mxu0 0
        %1163 = vmatmul.mubr.bf16.gmra.mrb[0].mxu0 %v1111
        %v1164 = vpop.f32.mrb[0].mxu0
        %v1165 = vadd.f32 %v1065, %v1164
        %v1166 = vpop.f32.mrb[0].mxu0
        %v1167 = vpop.f32.mrb[0].mxu0
        %v1168 = vadd.f32 %v1068, %v1167
        %v1169 = vpop.f32.mrb[0].mxu0
        %1170 = vmatprep.mubr.bf16.mxu0 0
        %1171 = vmatmul.mubr.bf16.gmra.mrb[0].mxu0 %v1114
        %v1172 = vpop.f32.mrb[0].mxu0
        %v1173 = vadd.f32 %v1073, %v1172
        %v1174 = vpop.f32.mrb[0].mxu0
        %v1175 = vpop.f32.mrb[0].mxu0
        %v1176 = vadd.f32 %v1076, %v1175
        %v1177 = vpop.f32.mrb[0].mxu0
        %1178 = vmatprep.mubr.bf16.mxu0 0
        %1179 = vmatmul.mubr.bf16.gmra.mrb[0].mxu0 %v1117
        %v1180 = vpop.f32.mrb[0].mxu0
        %v1181 = vadd.f32 %v1081, %v1180
        %v1182 = vpop.f32.mrb[0].mxu0
        %v1183 = vpop.f32.mrb[0].mxu0
        %v1184 = vadd.f32 %v1084, %v1183
        %v1185 = vpop.f32.mrb[0].mxu0
        %1186 = vdwg.mxu0
        %v1187 = vld [vmem:[%s651 + $0x1] sm:$0xff]
        %v1188 = vld [vmem:[%s651 + $0x11] sm:$0xff]
        %v1189 = vld [vmem:[%s651 + $0x21] sm:$0xff]
        %v1190 = vld [vmem:[%s651 + $0x31] sm:$0xff]
        %v1191 = vld [vmem:[%s651 + $0x41] sm:$0xff]
        %v1192 = vld [vmem:[%s651 + $0x51] sm:$0xff]
        %v1193 = vld [vmem:[%s651 + $0x61] sm:$0xff]
        %v1194 = vld [vmem:[%s651 + $0x71] sm:$0xff]
        %v1195 = vpack.c.bf16 %v1187, %v1187
        %v1196 = vpack.c.bf16 %v1188, %v1188
        %v1197 = vpack.c.bf16 %v1189, %v1189
        %v1198 = vpack.c.bf16 %v1190, %v1190
        %v1199 = vpack.c.bf16 %v1191, %v1191
        %v1200 = vpack.c.bf16 %v1192, %v1192
        %v1201 = vpack.c.bf16 %v1193, %v1193
        %v1202 = vpack.c.bf16 %v1194, %v1194
        %s1203 = scalar_lea.vmem [#allocation8], 24
        %v1204 = vld [vmem:[%s1203] sm:$0xf]
        %v1213 = vunpack.c.l.b16 %v1195
        %v1214 = vunpack.c.l.b16 %v1196
        %v1215 = vunpack.c.l.b16 %v1197
        %v1216 = vunpack.c.l.b16 %v1198
        %v1217 = vunpack.c.l.b16 %v1199
        %v1218 = vunpack.c.l.b16 %v1200
        %v1219 = vunpack.c.l.b16 %v1201
        %v1220 = vunpack.c.l.b16 %v1202
        %v1221 = vpack.c.b16 %v1214, %v1213
        %v1222 = vpack.c.b16 %v1216, %v1215
        %v1223 = vpack.c.b16 %v1218, %v1217
        %v1224 = vpack.c.b16 %v1220, %v1219
        %v1226 = vsel %vm387, %v1221, 0
        %v1229 = vsel %vm387, %v1222, 0
        %v1232 = vsel %vm387, %v1223, 0
        %v1235 = vsel %vm387, %v1224, 0
        %v1238 = vsel %vm482, %v1204, 0
        %1240 = vmatprep.subr.bf16.mxu0 0
        %1241 = vmatpush1.bf16.msra.mxu0 %v1238
        %1242 = vmatprep.subr.bf16.mxu0 0
        %1243 = vmatpush1.bf16.msra.mxu0 0
        %1244 = vmatprep.subr.bf16.mxu0 0
        %1245 = vmatpush1.bf16.msra.mxu0 0
        %1246 = vmatprep.subr.bf16.mxu0 0
        %1247 = vmatpush1.bf16.msra.mxu0 0
        %1248 = vmatprep.subr.bf16.mxu0 0
        %1249 = vmatpush1.bf16.msra.mxu0 0
        %1250 = vmatprep.subr.bf16.mxu0 0
        %1251 = vmatpush1.bf16.msra.mxu0 0
        %1252 = vmatprep.subr.bf16.mxu0 0
        %1253 = vmatpush1.bf16.msra.mxu0 0
        %1254 = vmatprep.subr.bf16.mxu0 0
        %1255 = vmatpush1.bf16.msra.mxu0 0
        %1256 = vmatprep.subr.bf16.mxu0 0
        %1257 = vmatpush1.bf16.msra.mxu0 0
        %1258 = vmatprep.subr.bf16.mxu0 0
        %1259 = vmatpush1.bf16.msra.mxu0 0
        %1260 = vmatprep.subr.bf16.mxu0 0
        %1261 = vmatpush1.bf16.msra.mxu0 0
        %1262 = vmatprep.subr.bf16.mxu0 0
        %1263 = vmatpush1.bf16.msra.mxu0 0
        %1264 = vmatprep.subr.bf16.mxu0 0
        %1265 = vmatpush1.bf16.msra.mxu0 0
        %1266 = vmatprep.subr.bf16.mxu0 0
        %1267 = vmatpush1.bf16.msra.mxu0 0
        %1268 = vmatprep.subr.bf16.mxu0 0
        %1269 = vmatpush1.bf16.msra.mxu0 0
        %1270 = vmatprep.subr.bf16.mxu0 0
        %1271 = vmatpush1.bf16.msra.mxu0 0
        %1272 = vmatprep.mubr.bf16.mxu0 0
        %1273 = vmatmul.mubr.bf16.gmra.mrb[0].mxu0 %v1226
        %v1274 = vpop.f32.mrb[0].mxu0
        %v1275 = vadd.f32 0.0, %v1274
        %v1276 = vpop.f32.mrb[0].mxu0
        %v1277 = vpop.f32.mrb[0].mxu0
        %v1278 = vadd.f32 0.0, %v1277
        %v1279 = vpop.f32.mrb[0].mxu0
        %1280 = vmatprep.mubr.bf16.mxu0 0
        %1281 = vmatmul.mubr.bf16.gmra.mrb[0].mxu0 %v1229
        %v1282 = vpop.f32.mrb[0].mxu0
        %v1283 = vadd.f32 0.0, %v1282
        %v1284 = vpop.f32.mrb[0].mxu0
        %v1285 = vpop.f32.mrb[0].mxu0
        %v1286 = vadd.f32 0.0, %v1285
        %v1287 = vpop.f32.mrb[0].mxu0
        %1288 = vmatprep.mubr.bf16.mxu0 0
        %1289 = vmatmul.mubr.bf16.gmra.mrb[0].mxu0 %v1232
        %v1290 = vpop.f32.mrb[0].mxu0
        %v1291 = vadd.f32 0.0, %v1290
        %v1292 = vpop.f32.mrb[0].mxu0
        %v1293 = vpop.f32.mrb[0].mxu0
        %v1294 = vadd.f32 0.0, %v1293
        %v1295 = vpop.f32.mrb[0].mxu0
        %1296 = vmatprep.mubr.bf16.mxu0 0
        %1297 = vmatmul.mubr.bf16.gmra.mrb[0].mxu0 %v1235
        %v1298 = vpop.f32.mrb[0].mxu0
        %v1299 = vadd.f32 0.0, %v1298
        %v1300 = vpop.f32.mrb[0].mxu0
        %v1301 = vpop.f32.mrb[0].mxu0
        %v1302 = vadd.f32 0.0, %v1301
        %v1303 = vpop.f32.mrb[0].mxu0
        %1304 = vdwg.mxu0
        %v1305 = vadd.f32 %v1157, %v1275
        %v1306 = vadd.f32 %v1160, %v1278
        %v1307 = vadd.f32 %v1165, %v1283
        %v1308 = vadd.f32 %v1168, %v1286
        %v1309 = vadd.f32 %v1173, %v1291
        %v1310 = vadd.f32 %v1176, %v1294
        %v1311 = vadd.f32 %v1181, %v1299
        %v1312 = vadd.f32 %v1184, %v1302
        %v1313 = vld [vmem:[%s651 + $0x2] sm:$0xff]
        %v1314 = vld [vmem:[%s651 + $0x12] sm:$0xff]
        %v1315 = vld [vmem:[%s651 + $0x22] sm:$0xff]
        %v1316 = vld [vmem:[%s651 + $0x32] sm:$0xff]
        %v1317 = vld [vmem:[%s651 + $0x42] sm:$0xff]
        %v1318 = vld [vmem:[%s651 + $0x52] sm:$0xff]
        %v1319 = vld [vmem:[%s651 + $0x62] sm:$0xff]
        %v1320 = vld [vmem:[%s651 + $0x72] sm:$0xff]
        %v1321 = vpack.c.bf16 %v1313, %v1313
        %v1322 = vpack.c.bf16 %v1314, %v1314
        %v1323 = vpack.c.bf16 %v1315, %v1315
        %v1324 = vpack.c.bf16 %v1316, %v1316
        %v1325 = vpack.c.bf16 %v1317, %v1317
        %v1326 = vpack.c.bf16 %v1318, %v1318
        %v1327 = vpack.c.bf16 %v1319, %v1319
        %v1328 = vpack.c.bf16 %v1320, %v1320
        %s1329 = scalar_lea.vmem [#allocation8], 16
        %v1330 = vld [vmem:[%s1329] sm:$0xf]
        %v1339 = vunpack.c.l.b16 %v1321
        %v1340 = vunpack.c.l.b16 %v1322
        %v1341 = vunpack.c.l.b16 %v1323
        %v1342 = vunpack.c.l.b16 %v1324
        %v1343 = vunpack.c.l.b16 %v1325
        %v1344 = vunpack.c.l.b16 %v1326
        %v1345 = vunpack.c.l.b16 %v1327
        %v1346 = vunpack.c.l.b16 %v1328
        %v1347 = vpack.c.b16 %v1340, %v1339
        %v1348 = vpack.c.b16 %v1342, %v1341
        %v1349 = vpack.c.b16 %v1344, %v1343
        %v1350 = vpack.c.b16 %v1346, %v1345
        %v1352 = vsel %vm387, %v1347, 0
        %v1355 = vsel %vm387, %v1348, 0
        %v1358 = vsel %vm387, %v1349, 0
        %v1361 = vsel %vm387, %v1350, 0
        %v1364 = vsel %vm482, %v1330, 0
        %1366 = vmatprep.subr.bf16.mxu0 0
        %1367 = vmatpush1.bf16.msra.mxu0 %v1364
        %1368 = vmatprep.subr.bf16.mxu0 0
        %1369 = vmatpush1.bf16.msra.mxu0 0
        %1370 = vmatprep.subr.bf16.mxu0 0
        %1371 = vmatpush1.bf16.msra.mxu0 0
        %1372 = vmatprep.subr.bf16.mxu0 0
        %1373 = vmatpush1.bf16.msra.mxu0 0
        %1374 = vmatprep.subr.bf16.mxu0 0
        %1375 = vmatpush1.bf16.msra.mxu0 0
        %1376 = vmatprep.subr.bf16.mxu0 0
        %1377 = vmatpush1.bf16.msra.mxu0 0
        %1378 = vmatprep.subr.bf16.mxu0 0
        %1379 = vmatpush1.bf16.msra.mxu0 0
        %1380 = vmatprep.subr.bf16.mxu0 0
        %1381 = vmatpush1.bf16.msra.mxu0 0
        %1382 = vmatprep.subr.bf16.mxu0 0
        %1383 = vmatpush1.bf16.msra.mxu0 0
        %1384 = vmatprep.subr.bf16.mxu0 0
        %1385 = vmatpush1.bf16.msra.mxu0 0
        %1386 = vmatprep.subr.bf16.mxu0 0
        %1387 = vmatpush1.bf16.msra.mxu0 0
        %1388 = vmatprep.subr.bf16.mxu0 0
        %1389 = vmatpush1.bf16.msra.mxu0 0
        %1390 = vmatprep.subr.bf16.mxu0 0
        %1391 = vmatpush1.bf16.msra.mxu0 0
        %1392 = vmatprep.subr.bf16.mxu0 0
        %1393 = vmatpush1.bf16.msra.mxu0 0
        %1394 = vmatprep.subr.bf16.mxu0 0
        %1395 = vmatpush1.bf16.msra.mxu0 0
        %1396 = vmatprep.subr.bf16.mxu0 0
        %1397 = vmatpush1.bf16.msra.mxu0 0
        %1398 = vmatprep.mubr.bf16.mxu0 0
        %1399 = vmatmul.mubr.bf16.gmra.mrb[0].mxu0 %v1352
        %v1400 = vpop.f32.mrb[0].mxu0
        %v1401 = vadd.f32 0.0, %v1400
        %v1402 = vpop.f32.mrb[0].mxu0
        %v1403 = vpop.f32.mrb[0].mxu0
        %v1404 = vadd.f32 0.0, %v1403
        %v1405 = vpop.f32.mrb[0].mxu0
        %1406 = vmatprep.mubr.bf16.mxu0 0
        %1407 = vmatmul.mubr.bf16.gmra.mrb[0].mxu0 %v1355
        %v1408 = vpop.f32.mrb[0].mxu0
        %v1409 = vadd.f32 0.0, %v1408
        %v1410 = vpop.f32.mrb[0].mxu0
        %v1411 = vpop.f32.mrb[0].mxu0
        %v1412 = vadd.f32 0.0, %v1411
        %v1413 = vpop.f32.mrb[0].mxu0
        %1414 = vmatprep.mubr.bf16.mxu0 0
        %1415 = vmatmul.mubr.bf16.gmra.mrb[0].mxu0 %v1358
        %v1416 = vpop.f32.mrb[0].mxu0
        %v1417 = vadd.f32 0.0, %v1416
        %v1418 = vpop.f32.mrb[0].mxu0
        %v1419 = vpop.f32.mrb[0].mxu0
        %v1420 = vadd.f32 0.0, %v1419
        %v1421 = vpop.f32.mrb[0].mxu0
        %1422 = vmatprep.mubr.bf16.mxu0 0
        %1423 = vmatmul.mubr.bf16.gmra.mrb[0].mxu0 %v1361
        %v1424 = vpop.f32.mrb[0].mxu0
        %v1425 = vadd.f32 0.0, %v1424
        %v1426 = vpop.f32.mrb[0].mxu0
        %v1427 = vpop.f32.mrb[0].mxu0
        %v1428 = vadd.f32 0.0, %v1427
        %v1429 = vpop.f32.mrb[0].mxu0
        %1430 = vdwg.mxu0
        %v1431 = vadd.f32 %v1305, %v1401
        %v1432 = vadd.f32 %v1306, %v1404
        %v1433 = vadd.f32 %v1307, %v1409
        %v1434 = vadd.f32 %v1308, %v1412
        %v1435 = vadd.f32 %v1309, %v1417
        %v1436 = vadd.f32 %v1310, %v1420
        %v1437 = vadd.f32 %v1311, %v1425
        %v1438 = vadd.f32 %v1312, %v1428
        %v1439 = vld [vmem:[#allocation9] sm:$0x1]
        %v1441 = vlaneseq
        %v1442 = vshrl.u32 %v1441, 7
        %v1443 = vsub.s32 0, %v1442
        %v1444 = vrot.slane %v1439, %v1443
        %v1446 = vmul.f32 %v1431, %v1444
        %v1447 = vmul.f32 %v1432, %v1444
        %v1448 = vmul.f32 %v1433, %v1444
        %v1449 = vmul.f32 %v1434, %v1444
        %v1450 = vmul.f32 %v1435, %v1444
        %v1451 = vmul.f32 %v1436, %v1444
        %v1452 = vmul.f32 %v1437, %v1444
        %v1453 = vmul.f32 %v1438, %v1444
        %v1454 = vld [vmem:[#allocation11] sm:$0x1]
        %v1456 = vlaneseq
        %v1457 = vshrl.u32 %v1456, 7
        %v1458 = vsub.s32 0, %v1457
        %v1459 = vrot.slane %v1454, %v1458
        %v1461 = vadd.f32 %v1446, %v1459
        %v1462 = vadd.f32 %v1447, %v1459
        %v1463 = vadd.f32 %v1448, %v1459
        %v1464 = vadd.f32 %v1449, %v1459
        %v1465 = vadd.f32 %v1450, %v1459
        %v1466 = vadd.f32 %v1451, %v1459
        %v1467 = vadd.f32 %v1452, %v1459
        %v1468 = vadd.f32 %v1453, %v1459
        %v1469 = vmax.f32 %v1461, 0.0
        %v1470 = vmax.f32 %v1462, 0.0
        %v1471 = vmax.f32 %v1463, 0.0
        %v1472 = vmax.f32 %v1464, 0.0
        %v1473 = vmax.f32 %v1465, 0.0
        %v1474 = vmax.f32 %v1466, 0.0
        %v1475 = vmax.f32 %v1467, 0.0
        %v1476 = vmax.f32 %v1468, 0.0
        %1485 = vrot.lane.b32.xlu0 %v1469, 16
        %v1486 = vpop.permute.xlu0 %1485
        %1487 = vrot.lane.b32.xlu0 %v1470, 16
        %v1488 = vpop.permute.xlu0 %1487
        %1489 = vrot.lane.b32.xlu0 %v1471, 16
        %v1490 = vpop.permute.xlu0 %1489
        %1491 = vrot.lane.b32.xlu0 %v1472, 16
        %v1492 = vpop.permute.xlu0 %1491
        %1493 = vrot.lane.b32.xlu0 %v1473, 16
        %v1494 = vpop.permute.xlu0 %1493
        %1495 = vrot.lane.b32.xlu0 %v1474, 16
        %v1496 = vpop.permute.xlu0 %1495
        %1497 = vrot.lane.b32.xlu0 %v1475, 16
        %v1498 = vpop.permute.xlu0 %1497
        %1499 = vrot.lane.b32.xlu0 %v1476, 16
        %v1500 = vpop.permute.xlu0 %1499
        %vm1509 = vcmask 261248
        %1510 = vst.msk [vmem:[%s359] sm:$0xff] %vm1509, %v1486
        %1511 = vst.msk [vmem:[%s359 + $0x10] sm:$0xff] %vm1509, %v1488
        %1512 = vst.msk [vmem:[%s359 + $0x20] sm:$0xff] %vm1509, %v1490
        %1513 = vst.msk [vmem:[%s359 + $0x30] sm:$0xff] %vm1509, %v1492
        %1514 = vst.msk [vmem:[%s359 + $0x40] sm:$0xff] %vm1509, %v1494
        %1515 = vst.msk [vmem:[%s359 + $0x50] sm:$0xff] %vm1509, %v1496
        %1516 = vst.msk [vmem:[%s359 + $0x60] sm:$0xff] %vm1509, %v1498
        %1517 = vst.msk [vmem:[%s359 + $0x70] sm:$0xff] %vm1509, %v1500
        %v1518 = vld [vmem:[%s651] sm:$0xff]
        %v1519 = vld [vmem:[%s651 + $0x10] sm:$0xff]
        %v1520 = vld [vmem:[%s651 + $0x20] sm:$0xff]
        %v1521 = vld [vmem:[%s651 + $0x30] sm:$0xff]
        %v1522 = vld [vmem:[%s651 + $0x40] sm:$0xff]
        %v1523 = vld [vmem:[%s651 + $0x50] sm:$0xff]
        %v1524 = vld [vmem:[%s651 + $0x60] sm:$0xff]
        %v1525 = vld [vmem:[%s651 + $0x70] sm:$0xff]
        %v1526 = vpack.c.bf16 %v1518, %v1518
        %v1527 = vpack.c.bf16 %v1519, %v1519
        %v1528 = vpack.c.bf16 %v1520, %v1520
        %v1529 = vpack.c.bf16 %v1521, %v1521
        %v1530 = vpack.c.bf16 %v1522, %v1522
        %v1531 = vpack.c.bf16 %v1523, %v1523
        %v1532 = vpack.c.bf16 %v1524, %v1524
        %v1533 = vpack.c.bf16 %v1525, %v1525
        %s1534 = scalar_lea.vmem [#allocation8], 44
        %v1535 = vld [vmem:[%s1534] sm:$0xf]
        %v1536 = vld [vmem:[%s651 + $0x1] sm:$0xff]
        %v1537 = vld [vmem:[%s651 + $0x11] sm:$0xff]
        %v1538 = vld [vmem:[%s651 + $0x21] sm:$0xff]
        %v1539 = vld [vmem:[%s651 + $0x31] sm:$0xff]
        %v1540 = vld [vmem:[%s651 + $0x41] sm:$0xff]
        %v1541 = vld [vmem:[%s651 + $0x51] sm:$0xff]
        %v1542 = vld [vmem:[%s651 + $0x61] sm:$0xff]
        %v1543 = vld [vmem:[%s651 + $0x71] sm:$0xff]
        %v1544 = vpack.c.bf16 %v1536, %v1536
        %v1545 = vpack.c.bf16 %v1537, %v1537
        %v1546 = vpack.c.bf16 %v1538, %v1538
        %v1547 = vpack.c.bf16 %v1539, %v1539
        %v1548 = vpack.c.bf16 %v1540, %v1540
        %v1549 = vpack.c.bf16 %v1541, %v1541
        %v1550 = vpack.c.bf16 %v1542, %v1542
        %v1551 = vpack.c.bf16 %v1543, %v1543
        %s1552 = scalar_lea.vmem [#allocation8], 36
        %v1553 = vld [vmem:[%s1552] sm:$0xf]
        %v1562 = vunpack.c.l.b16 %v1544
        %v1563 = vunpack.c.l.b16 %v1545
        %v1564 = vunpack.c.l.b16 %v1546
        %v1565 = vunpack.c.l.b16 %v1547
        %v1566 = vunpack.c.l.b16 %v1548
        %v1567 = vunpack.c.l.b16 %v1549
        %v1568 = vunpack.c.l.b16 %v1550
        %v1569 = vunpack.c.l.b16 %v1551
        %v1570 = vpack.c.b16 %v1563, %v1562
        %v1571 = vpack.c.b16 %v1565, %v1564
        %v1572 = vpack.c.b16 %v1567, %v1566
        %v1573 = vpack.c.b16 %v1569, %v1568
        %v1575 = vsel %vm387, %v1570, 0
        %v1578 = vsel %vm387, %v1571, 0
        %v1581 = vsel %vm387, %v1572, 0
        %v1584 = vsel %vm387, %v1573, 0
        %v1587 = vsel %vm482, %v1553, 0
        %1589 = vmatprep.subr.bf16.mxu0 0
        %1590 = vmatpush1.bf16.msra.mxu0 %v1587
        %1591 = vmatprep.subr.bf16.mxu0 0
        %1592 = vmatpush1.bf16.msra.mxu0 0
        %1593 = vmatprep.subr.bf16.mxu0 0
        %1594 = vmatpush1.bf16.msra.mxu0 0
        %1595 = vmatprep.subr.bf16.mxu0 0
        %1596 = vmatpush1.bf16.msra.mxu0 0
        %1597 = vmatprep.subr.bf16.mxu0 0
        %1598 = vmatpush1.bf16.msra.mxu0 0
        %1599 = vmatprep.subr.bf16.mxu0 0
        %1600 = vmatpush1.bf16.msra.mxu0 0
        %1601 = vmatprep.subr.bf16.mxu0 0
        %1602 = vmatpush1.bf16.msra.mxu0 0
        %1603 = vmatprep.subr.bf16.mxu0 0
        %1604 = vmatpush1.bf16.msra.mxu0 0
        %1605 = vmatprep.subr.bf16.mxu0 0
        %1606 = vmatpush1.bf16.msra.mxu0 0
        %1607 = vmatprep.subr.bf16.mxu0 0
        %1608 = vmatpush1.bf16.msra.mxu0 0
        %1609 = vmatprep.subr.bf16.mxu0 0
        %1610 = vmatpush1.bf16.msra.mxu0 0
        %1611 = vmatprep.subr.bf16.mxu0 0
        %1612 = vmatpush1.bf16.msra.mxu0 0
        %1613 = vmatprep.subr.bf16.mxu0 0
        %1614 = vmatpush1.bf16.msra.mxu0 0
        %1615 = vmatprep.subr.bf16.mxu0 0
        %1616 = vmatpush1.bf16.msra.mxu0 0
        %1617 = vmatprep.subr.bf16.mxu0 0
        %1618 = vmatpush1.bf16.msra.mxu0 0
        %1619 = vmatprep.subr.bf16.mxu0 0
        %1620 = vmatpush1.bf16.msra.mxu0 0
        %1621 = vmatprep.mubr.bf16.mxu0 0
        %1622 = vmatmul.mubr.bf16.gmra.mrb[0].mxu0 %v1575
        %v1623 = vpop.f32.mrb[0].mxu0
        %v1624 = vadd.f32 0.0, %v1623
        %v1625 = vpop.f32.mrb[0].mxu0
        %v1626 = vpop.f32.mrb[0].mxu0
        %v1627 = vadd.f32 0.0, %v1626
        %v1628 = vpop.f32.mrb[0].mxu0
        %1629 = vmatprep.mubr.bf16.mxu0 0
        %1630 = vmatmul.mubr.bf16.gmra.mrb[0].mxu0 %v1578
        %v1631 = vpop.f32.mrb[0].mxu0
        %v1632 = vadd.f32 0.0, %v1631
        %v1633 = vpop.f32.mrb[0].mxu0
        %v1634 = vpop.f32.mrb[0].mxu0
        %v1635 = vadd.f32 0.0, %v1634
        %v1636 = vpop.f32.mrb[0].mxu0
        %1637 = vmatprep.mubr.bf16.mxu0 0
        %1638 = vmatmul.mubr.bf16.gmra.mrb[0].mxu0 %v1581
        %v1639 = vpop.f32.mrb[0].mxu0
        %v1640 = vadd.f32 0.0, %v1639
        %v1641 = vpop.f32.mrb[0].mxu0
        %v1642 = vpop.f32.mrb[0].mxu0
        %v1643 = vadd.f32 0.0, %v1642
        %v1644 = vpop.f32.mrb[0].mxu0
        %1645 = vmatprep.mubr.bf16.mxu0 0
        %1646 = vmatmul.mubr.bf16.gmra.mrb[0].mxu0 %v1584
        %v1647 = vpop.f32.mrb[0].mxu0
        %v1648 = vadd.f32 0.0, %v1647
        %v1649 = vpop.f32.mrb[0].mxu0
        %v1650 = vpop.f32.mrb[0].mxu0
        %v1651 = vadd.f32 0.0, %v1650
        %v1652 = vpop.f32.mrb[0].mxu0
        %1653 = vdwg.mxu0
        %v1662 = vunpack.c.l.b16 %v1526
        %v1663 = vunpack.c.l.b16 %v1527
        %v1664 = vunpack.c.l.b16 %v1528
        %v1665 = vunpack.c.l.b16 %v1529
        %v1666 = vunpack.c.l.b16 %v1530
        %v1667 = vunpack.c.l.b16 %v1531
        %v1668 = vunpack.c.l.b16 %v1532
        %v1669 = vunpack.c.l.b16 %v1533
        %v1670 = vpack.c.b16 %v1663, %v1662
        %v1671 = vpack.c.b16 %v1665, %v1664
        %v1672 = vpack.c.b16 %v1667, %v1666
        %v1673 = vpack.c.b16 %v1669, %v1668
        %v1675 = vsel %vm387, %v1670, 0
        %v1678 = vsel %vm387, %v1671, 0
        %v1681 = vsel %vm387, %v1672, 0
        %v1684 = vsel %vm387, %v1673, 0
        %v1687 = vsel %vm482, %v1535, 0
        %1689 = vmatprep.subr.bf16.mxu0 0
        %1690 = vmatpush1.bf16.msra.mxu0 %v1687
        %1691 = vmatprep.subr.bf16.mxu0 0
        %1692 = vmatpush1.bf16.msra.mxu0 0
        %1693 = vmatprep.subr.bf16.mxu0 0
        %1694 = vmatpush1.bf16.msra.mxu0 0
        %1695 = vmatprep.subr.bf16.mxu0 0
        %1696 = vmatpush1.bf16.msra.mxu0 0
        %1697 = vmatprep.subr.bf16.mxu0 0
        %1698 = vmatpush1.bf16.msra.mxu0 0
        %1699 = vmatprep.subr.bf16.mxu0 0
        %1700 = vmatpush1.bf16.msra.mxu0 0
        %1701 = vmatprep.subr.bf16.mxu0 0
        %1702 = vmatpush1.bf16.msra.mxu0 0
        %1703 = vmatprep.subr.bf16.mxu0 0
        %1704 = vmatpush1.bf16.msra.mxu0 0
        %1705 = vmatprep.subr.bf16.mxu0 0
        %1706 = vmatpush1.bf16.msra.mxu0 0
        %1707 = vmatprep.subr.bf16.mxu0 0
        %1708 = vmatpush1.bf16.msra.mxu0 0
        %1709 = vmatprep.subr.bf16.mxu0 0
        %1710 = vmatpush1.bf16.msra.mxu0 0
        %1711 = vmatprep.subr.bf16.mxu0 0
        %1712 = vmatpush1.bf16.msra.mxu0 0
        %1713 = vmatprep.subr.bf16.mxu0 0
        %1714 = vmatpush1.bf16.msra.mxu0 0
        %1715 = vmatprep.subr.bf16.mxu0 0
        %1716 = vmatpush1.bf16.msra.mxu0 0
        %1717 = vmatprep.subr.bf16.mxu0 0
        %1718 = vmatpush1.bf16.msra.mxu0 0
        %1719 = vmatprep.subr.bf16.mxu0 0
        %1720 = vmatpush1.bf16.msra.mxu0 0
        %1721 = vmatprep.mubr.bf16.mxu0 0
        %1722 = vmatmul.mubr.bf16.gmra.mrb[0].mxu0 %v1675
        %v1723 = vpop.f32.mrb[0].mxu0
        %v1724 = vadd.f32 %v1624, %v1723
        %v1725 = vpop.f32.mrb[0].mxu0
        %v1726 = vpop.f32.mrb[0].mxu0
        %v1727 = vadd.f32 %v1627, %v1726
        %v1728 = vpop.f32.mrb[0].mxu0
        %1729 = vmatprep.mubr.bf16.mxu0 0
        %1730 = vmatmul.mubr.bf16.gmra.mrb[0].mxu0 %v1678
        %v1731 = vpop.f32.mrb[0].mxu0
        %v1732 = vadd.f32 %v1632, %v1731
        %v1733 = vpop.f32.mrb[0].mxu0
        %v1734 = vpop.f32.mrb[0].mxu0
        %v1735 = vadd.f32 %v1635, %v1734
        %v1736 = vpop.f32.mrb[0].mxu0
        %1737 = vmatprep.mubr.bf16.mxu0 0
        %1738 = vmatmul.mubr.bf16.gmra.mrb[0].mxu0 %v1681
        %v1739 = vpop.f32.mrb[0].mxu0
        %v1740 = vadd.f32 %v1640, %v1739
        %v1741 = vpop.f32.mrb[0].mxu0
        %v1742 = vpop.f32.mrb[0].mxu0
        %v1743 = vadd.f32 %v1643, %v1742
        %v1744 = vpop.f32.mrb[0].mxu0
        %1745 = vmatprep.mubr.bf16.mxu0 0
        %1746 = vmatmul.mubr.bf16.gmra.mrb[0].mxu0 %v1684
        %v1747 = vpop.f32.mrb[0].mxu0
        %v1748 = vadd.f32 %v1648, %v1747
        %v1749 = vpop.f32.mrb[0].mxu0
        %v1750 = vpop.f32.mrb[0].mxu0
        %v1751 = vadd.f32 %v1651, %v1750
        %v1752 = vpop.f32.mrb[0].mxu0
        %1753 = vdwg.mxu0
        %s1754 = scalar_lea.vmem [#allocation2], 32
        %v1755 = vld [vmem:[%s1754] sm:$0xff]
        %v1756 = vld [vmem:[%s1754 + $0x10] sm:$0xff]
        %v1757 = vld [vmem:[%s1754 + $0x20] sm:$0xff]
        %v1758 = vld [vmem:[%s1754 + $0x30] sm:$0xff]
        %v1759 = vld [vmem:[%s1754 + $0x40] sm:$0xff]
        %v1760 = vld [vmem:[%s1754 + $0x50] sm:$0xff]
        %v1761 = vld [vmem:[%s1754 + $0x60] sm:$0xff]
        %v1762 = vld [vmem:[%s1754 + $0x70] sm:$0xff]
        %v1763 = vpack.c.bf16 %v1755, %v1755
        %v1764 = vpack.c.bf16 %v1756, %v1756
        %v1765 = vpack.c.bf16 %v1757, %v1757
        %v1766 = vpack.c.bf16 %v1758, %v1758
        %v1767 = vpack.c.bf16 %v1759, %v1759
        %v1768 = vpack.c.bf16 %v1760, %v1760
        %v1769 = vpack.c.bf16 %v1761, %v1761
        %v1770 = vpack.c.bf16 %v1762, %v1762
        %s1771 = scalar_lea.vmem [#allocation8], 12
        %v1772 = vld [vmem:[%s1771] sm:$0xf]
        %v1781 = vunpack.c.l.b16 %v1763
        %v1782 = vunpack.c.l.b16 %v1764
        %v1783 = vunpack.c.l.b16 %v1765
        %v1784 = vunpack.c.l.b16 %v1766
        %v1785 = vunpack.c.l.b16 %v1767
        %v1786 = vunpack.c.l.b16 %v1768
        %v1787 = vunpack.c.l.b16 %v1769
        %v1788 = vunpack.c.l.b16 %v1770
        %v1789 = vpack.c.b16 %v1782, %v1781
        %v1790 = vpack.c.b16 %v1784, %v1783
        %v1791 = vpack.c.b16 %v1786, %v1785
        %v1792 = vpack.c.b16 %v1788, %v1787
        %v1794 = vsel %vm387, %v1789, 0
        %v1797 = vsel %vm387, %v1790, 0
        %v1800 = vsel %vm387, %v1791, 0
        %v1803 = vsel %vm387, %v1792, 0
        %v1806 = vsel %vm482, %v1772, 0
        %1808 = vmatprep.subr.bf16.mxu0 0
        %1809 = vmatpush1.bf16.msra.mxu0 %v1806
        %1810 = vmatprep.subr.bf16.mxu0 0
        %1811 = vmatpush1.bf16.msra.mxu0 0
        %1812 = vmatprep.subr.bf16.mxu0 0
        %1813 = vmatpush1.bf16.msra.mxu0 0
        %1814 = vmatprep.subr.bf16.mxu0 0
        %1815 = vmatpush1.bf16.msra.mxu0 0
        %1816 = vmatprep.subr.bf16.mxu0 0
        %1817 = vmatpush1.bf16.msra.mxu0 0
        %1818 = vmatprep.subr.bf16.mxu0 0
        %1819 = vmatpush1.bf16.msra.mxu0 0
        %1820 = vmatprep.subr.bf16.mxu0 0
        %1821 = vmatpush1.bf16.msra.mxu0 0
        %1822 = vmatprep.subr.bf16.mxu0 0
        %1823 = vmatpush1.bf16.msra.mxu0 0
        %1824 = vmatprep.subr.bf16.mxu0 0
        %1825 = vmatpush1.bf16.msra.mxu0 0
        %1826 = vmatprep.subr.bf16.mxu0 0
        %1827 = vmatpush1.bf16.msra.mxu0 0
        %1828 = vmatprep.subr.bf16.mxu0 0
        %1829 = vmatpush1.bf16.msra.mxu0 0
        %1830 = vmatprep.subr.bf16.mxu0 0
        %1831 = vmatpush1.bf16.msra.mxu0 0
        %1832 = vmatprep.subr.bf16.mxu0 0
        %1833 = vmatpush1.bf16.msra.mxu0 0
        %1834 = vmatprep.subr.bf16.mxu0 0
        %1835 = vmatpush1.bf16.msra.mxu0 0
        %1836 = vmatprep.subr.bf16.mxu0 0
        %1837 = vmatpush1.bf16.msra.mxu0 0
        %1838 = vmatprep.subr.bf16.mxu0 0
        %1839 = vmatpush1.bf16.msra.mxu0 0
        %1840 = vmatprep.mubr.bf16.mxu0 0
        %1841 = vmatmul.mubr.bf16.gmra.mrb[0].mxu0 %v1794
        %v1842 = vpop.f32.mrb[0].mxu0
        %v1843 = vadd.f32 0.0, %v1842
        %v1844 = vpop.f32.mrb[0].mxu0
        %v1845 = vpop.f32.mrb[0].mxu0
        %v1846 = vadd.f32 0.0, %v1845
        %v1847 = vpop.f32.mrb[0].mxu0
        %1848 = vmatprep.mubr.bf16.mxu0 0
        %1849 = vmatmul.mubr.bf16.gmra.mrb[0].mxu0 %v1797
        %v1850 = vpop.f32.mrb[0].mxu0
        %v1851 = vadd.f32 0.0, %v1850
        %v1852 = vpop.f32.mrb[0].mxu0
        %v1853 = vpop.f32.mrb[0].mxu0
        %v1854 = vadd.f32 0.0, %v1853
        %v1855 = vpop.f32.mrb[0].mxu0
        %1856 = vmatprep.mubr.bf16.mxu0 0
        %1857 = vmatmul.mubr.bf16.gmra.mrb[0].mxu0 %v1800
        %v1858 = vpop.f32.mrb[0].mxu0
        %v1859 = vadd.f32 0.0, %v1858
        %v1860 = vpop.f32.mrb[0].mxu0
        %v1861 = vpop.f32.mrb[0].mxu0
        %v1862 = vadd.f32 0.0, %v1861
        %v1863 = vpop.f32.mrb[0].mxu0
        %1864 = vmatprep.mubr.bf16.mxu0 0
        %1865 = vmatmul.mubr.bf16.gmra.mrb[0].mxu0 %v1803
        %v1866 = vpop.f32.mrb[0].mxu0
        %v1867 = vadd.f32 0.0, %v1866
        %v1868 = vpop.f32.mrb[0].mxu0
        %v1869 = vpop.f32.mrb[0].mxu0
        %v1870 = vadd.f32 0.0, %v1869
        %v1871 = vpop.f32.mrb[0].mxu0
        %1872 = vdwg.mxu0
        %v1873 = vadd.f32 %v1724, %v1843
        %v1874 = vadd.f32 %v1727, %v1846
        %v1875 = vadd.f32 %v1732, %v1851
        %v1876 = vadd.f32 %v1735, %v1854
        %v1877 = vadd.f32 %v1740, %v1859
        %v1878 = vadd.f32 %v1743, %v1862
        %v1879 = vadd.f32 %v1748, %v1867
        %v1880 = vadd.f32 %v1751, %v1870
        %v1881 = vld [vmem:[%s1754 + $0x1] sm:$0xff]
        %v1882 = vld [vmem:[%s1754 + $0x11] sm:$0xff]
        %v1883 = vld [vmem:[%s1754 + $0x21] sm:$0xff]
        %v1884 = vld [vmem:[%s1754 + $0x31] sm:$0xff]
        %v1885 = vld [vmem:[%s1754 + $0x41] sm:$0xff]
        %v1886 = vld [vmem:[%s1754 + $0x51] sm:$0xff]
        %v1887 = vld [vmem:[%s1754 + $0x61] sm:$0xff]
        %v1888 = vld [vmem:[%s1754 + $0x71] sm:$0xff]
        %v1889 = vpack.c.bf16 %v1881, %v1881
        %v1890 = vpack.c.bf16 %v1882, %v1882
        %v1891 = vpack.c.bf16 %v1883, %v1883
        %v1892 = vpack.c.bf16 %v1884, %v1884
        %v1893 = vpack.c.bf16 %v1885, %v1885
        %v1894 = vpack.c.bf16 %v1886, %v1886
        %v1895 = vpack.c.bf16 %v1887, %v1887
        %v1896 = vpack.c.bf16 %v1888, %v1888
        %s1897 = scalar_lea.vmem [#allocation8], 4
        %v1898 = vld [vmem:[%s1897] sm:$0xf]
        %v1907 = vunpack.c.l.b16 %v1889
        %v1908 = vunpack.c.l.b16 %v1890
        %v1909 = vunpack.c.l.b16 %v1891
        %v1910 = vunpack.c.l.b16 %v1892
        %v1911 = vunpack.c.l.b16 %v1893
        %v1912 = vunpack.c.l.b16 %v1894
        %v1913 = vunpack.c.l.b16 %v1895
        %v1914 = vunpack.c.l.b16 %v1896
        %v1915 = vpack.c.b16 %v1908, %v1907
        %v1916 = vpack.c.b16 %v1910, %v1909
        %v1917 = vpack.c.b16 %v1912, %v1911
        %v1918 = vpack.c.b16 %v1914, %v1913
        %v1920 = vsel %vm387, %v1915, 0
        %v1923 = vsel %vm387, %v1916, 0
        %v1926 = vsel %vm387, %v1917, 0
        %v1929 = vsel %vm387, %v1918, 0
        %v1932 = vsel %vm482, %v1898, 0
        %1934 = vmatprep.subr.bf16.mxu0 0
        %1935 = vmatpush1.bf16.msra.mxu0 %v1932
        %1936 = vmatprep.subr.bf16.mxu0 0
        %1937 = vmatpush1.bf16.msra.mxu0 0
        %1938 = vmatprep.subr.bf16.mxu0 0
        %1939 = vmatpush1.bf16.msra.mxu0 0
        %1940 = vmatprep.subr.bf16.mxu0 0
        %1941 = vmatpush1.bf16.msra.mxu0 0
        %1942 = vmatprep.subr.bf16.mxu0 0
        %1943 = vmatpush1.bf16.msra.mxu0 0
        %1944 = vmatprep.subr.bf16.mxu0 0
        %1945 = vmatpush1.bf16.msra.mxu0 0
        %1946 = vmatprep.subr.bf16.mxu0 0
        %1947 = vmatpush1.bf16.msra.mxu0 0
        %1948 = vmatprep.subr.bf16.mxu0 0
        %1949 = vmatpush1.bf16.msra.mxu0 0
        %1950 = vmatprep.subr.bf16.mxu0 0
        %1951 = vmatpush1.bf16.msra.mxu0 0
        %1952 = vmatprep.subr.bf16.mxu0 0
        %1953 = vmatpush1.bf16.msra.mxu0 0
        %1954 = vmatprep.subr.bf16.mxu0 0
        %1955 = vmatpush1.bf16.msra.mxu0 0
        %1956 = vmatprep.subr.bf16.mxu0 0
        %1957 = vmatpush1.bf16.msra.mxu0 0
        %1958 = vmatprep.subr.bf16.mxu0 0
        %1959 = vmatpush1.bf16.msra.mxu0 0
        %1960 = vmatprep.subr.bf16.mxu0 0
        %1961 = vmatpush1.bf16.msra.mxu0 0
        %1962 = vmatprep.subr.bf16.mxu0 0
        %1963 = vmatpush1.bf16.msra.mxu0 0
        %1964 = vmatprep.subr.bf16.mxu0 0
        %1965 = vmatpush1.bf16.msra.mxu0 0
        %1966 = vmatprep.mubr.bf16.mxu0 0
        %1967 = vmatmul.mubr.bf16.gmra.mrb[0].mxu0 %v1920
        %v1968 = vpop.f32.mrb[0].mxu0
        %v1969 = vadd.f32 0.0, %v1968
        %v1970 = vpop.f32.mrb[0].mxu0
        %v1971 = vpop.f32.mrb[0].mxu0
        %v1972 = vadd.f32 0.0, %v1971
        %v1973 = vpop.f32.mrb[0].mxu0
        %1974 = vmatprep.mubr.bf16.mxu0 0
        %1975 = vmatmul.mubr.bf16.gmra.mrb[0].mxu0 %v1923
        %v1976 = vpop.f32.mrb[0].mxu0
        %v1977 = vadd.f32 0.0, %v1976
        %v1978 = vpop.f32.mrb[0].mxu0
        %v1979 = vpop.f32.mrb[0].mxu0
        %v1980 = vadd.f32 0.0, %v1979
        %v1981 = vpop.f32.mrb[0].mxu0
        %1982 = vmatprep.mubr.bf16.mxu0 0
        %1983 = vmatmul.mubr.bf16.gmra.mrb[0].mxu0 %v1926
        %v1984 = vpop.f32.mrb[0].mxu0
        %v1985 = vadd.f32 0.0, %v1984
        %v1986 = vpop.f32.mrb[0].mxu0
        %v1987 = vpop.f32.mrb[0].mxu0
        %v1988 = vadd.f32 0.0, %v1987
        %v1989 = vpop.f32.mrb[0].mxu0
        %1990 = vmatprep.mubr.bf16.mxu0 0
        %1991 = vmatmul.mubr.bf16.gmra.mrb[0].mxu0 %v1929
        %v1992 = vpop.f32.mrb[0].mxu0
        %v1993 = vadd.f32 0.0, %v1992
        %v1994 = vpop.f32.mrb[0].mxu0
        %v1995 = vpop.f32.mrb[0].mxu0
        %v1996 = vadd.f32 0.0, %v1995
        %v1997 = vpop.f32.mrb[0].mxu0
        %1998 = vdwg.mxu0
        %v1999 = vadd.f32 %v1873, %v1969
        %v2000 = vadd.f32 %v1874, %v1972
        %v2001 = vadd.f32 %v1875, %v1977
        %v2002 = vadd.f32 %v1876, %v1980
        %v2003 = vadd.f32 %v1877, %v1985
        %v2004 = vadd.f32 %v1878, %v1988
        %v2005 = vadd.f32 %v1879, %v1993
        %v2006 = vadd.f32 %v1880, %v1996
        %v2007 = vld [vmem:[#allocation9] sm:$0x1]
        %v2009 = vlaneseq
        %v2010 = vshrl.u32 %v2009, 7
        %v2011 = vsub.s32 0, %v2010
        %v2012 = vrot.slane %v2007, %v2011
        %v2014 = vmul.f32 %v1999, %v2012
        %v2015 = vmul.f32 %v2000, %v2012
        %v2016 = vmul.f32 %v2001, %v2012
        %v2017 = vmul.f32 %v2002, %v2012
        %v2018 = vmul.f32 %v2003, %v2012
        %v2019 = vmul.f32 %v2004, %v2012
        %v2020 = vmul.f32 %v2005, %v2012
        %v2021 = vmul.f32 %v2006, %v2012
        %v2022 = vld [vmem:[#allocation11] sm:$0x1]
        %v2024 = vlaneseq
        %v2025 = vshrl.u32 %v2024, 7
        %v2026 = vsub.s32 0, %v2025
        %v2027 = vrot.slane %v2022, %v2026
        %v2029 = vadd.f32 %v2014, %v2027
        %v2030 = vadd.f32 %v2015, %v2027
        %v2031 = vadd.f32 %v2016, %v2027
        %v2032 = vadd.f32 %v2017, %v2027
        %v2033 = vadd.f32 %v2018, %v2027
        %v2034 = vadd.f32 %v2019, %v2027
        %v2035 = vadd.f32 %v2020, %v2027
        %v2036 = vadd.f32 %v2021, %v2027
        %v2037 = vmax.f32 %v2029, 0.0
        %v2038 = vmax.f32 %v2030, 0.0
        %v2039 = vmax.f32 %v2031, 0.0
        %v2040 = vmax.f32 %v2032, 0.0
        %v2041 = vmax.f32 %v2033, 0.0
        %v2042 = vmax.f32 %v2034, 0.0
        %v2043 = vmax.f32 %v2035, 0.0
        %v2044 = vmax.f32 %v2036, 0.0
        %s2045 = scalar_lea.vmem %s359, 8 [#allocation12]
        %2046 = vst.msk [vmem:[%s2045] sm:$0xff] %vm942, %v2037
        %2047 = vst.msk [vmem:[%s2045 + $0x10] sm:$0xff] %vm942, %v2038
        %2048 = vst.msk [vmem:[%s2045 + $0x20] sm:$0xff] %vm942, %v2039
        %2049 = vst.msk [vmem:[%s2045 + $0x30] sm:$0xff] %vm942, %v2040
        %2050 = vst.msk [vmem:[%s2045 + $0x40] sm:$0xff] %vm942, %v2041
        %2051 = vst.msk [vmem:[%s2045 + $0x50] sm:$0xff] %vm942, %v2042
        %2052 = vst.msk [vmem:[%s2045 + $0x60] sm:$0xff] %vm942, %v2043
        %2053 = vst.msk [vmem:[%s2045 + $0x70] sm:$0xff] %vm942, %v2044
        %v2054 = vld [vmem:[%s651 + $0x1] sm:$0xff]
        %v2055 = vld [vmem:[%s651 + $0x11] sm:$0xff]
        %v2056 = vld [vmem:[%s651 + $0x21] sm:$0xff]
        %v2057 = vld [vmem:[%s651 + $0x31] sm:$0xff]
        %v2058 = vld [vmem:[%s651 + $0x41] sm:$0xff]
        %v2059 = vld [vmem:[%s651 + $0x51] sm:$0xff]
        %v2060 = vld [vmem:[%s651 + $0x61] sm:$0xff]
        %v2061 = vld [vmem:[%s651 + $0x71] sm:$0xff]
        %v2062 = vpack.c.bf16 %v2054, %v2054
        %v2063 = vpack.c.bf16 %v2055, %v2055
        %v2064 = vpack.c.bf16 %v2056, %v2056
        %v2065 = vpack.c.bf16 %v2057, %v2057
        %v2066 = vpack.c.bf16 %v2058, %v2058
        %v2067 = vpack.c.bf16 %v2059, %v2059
        %v2068 = vpack.c.bf16 %v2060, %v2060
        %v2069 = vpack.c.bf16 %v2061, %v2061
        %s2070 = scalar_lea.vmem [#allocation8], 40
        %v2071 = vld [vmem:[%s2070] sm:$0xf]
        %v2072 = vld [vmem:[%s651 + $0x2] sm:$0xff]
        %v2073 = vld [vmem:[%s651 + $0x12] sm:$0xff]
        %v2074 = vld [vmem:[%s651 + $0x22] sm:$0xff]
        %v2075 = vld [vmem:[%s651 + $0x32] sm:$0xff]
        %v2076 = vld [vmem:[%s651 + $0x42] sm:$0xff]
        %v2077 = vld [vmem:[%s651 + $0x52] sm:$0xff]
        %v2078 = vld [vmem:[%s651 + $0x62] sm:$0xff]
        %v2079 = vld [vmem:[%s651 + $0x72] sm:$0xff]
        %v2080 = vpack.c.bf16 %v2072, %v2072
        %v2081 = vpack.c.bf16 %v2073, %v2073
        %v2082 = vpack.c.bf16 %v2074, %v2074
        %v2083 = vpack.c.bf16 %v2075, %v2075
        %v2084 = vpack.c.bf16 %v2076, %v2076
        %v2085 = vpack.c.bf16 %v2077, %v2077
        %v2086 = vpack.c.bf16 %v2078, %v2078
        %v2087 = vpack.c.bf16 %v2079, %v2079
        %s2088 = scalar_lea.vmem [#allocation8], 32
        %v2089 = vld [vmem:[%s2088] sm:$0xf]
        %v2098 = vunpack.c.l.b16 %v2080
        %v2099 = vunpack.c.l.b16 %v2081
        %v2100 = vunpack.c.l.b16 %v2082
        %v2101 = vunpack.c.l.b16 %v2083
        %v2102 = vunpack.c.l.b16 %v2084
        %v2103 = vunpack.c.l.b16 %v2085
        %v2104 = vunpack.c.l.b16 %v2086
        %v2105 = vunpack.c.l.b16 %v2087
        %v2106 = vpack.c.b16 %v2099, %v2098
        %v2107 = vpack.c.b16 %v2101, %v2100
        %v2108 = vpack.c.b16 %v2103, %v2102
        %v2109 = vpack.c.b16 %v2105, %v2104
        %v2111 = vsel %vm387, %v2106, 0
        %v2114 = vsel %vm387, %v2107, 0
        %v2117 = vsel %vm387, %v2108, 0
        %v2120 = vsel %vm387, %v2109, 0
        %v2123 = vsel %vm482, %v2089, 0
        %2125 = vmatprep.subr.bf16.mxu0 0
        %2126 = vmatpush1.bf16.msra.mxu0 %v2123
        %2127 = vmatprep.subr.bf16.mxu0 0
        %2128 = vmatpush1.bf16.msra.mxu0 0
        %2129 = vmatprep.subr.bf16.mxu0 0
        %2130 = vmatpush1.bf16.msra.mxu0 0
        %2131 = vmatprep.subr.bf16.mxu0 0
        %2132 = vmatpush1.bf16.msra.mxu0 0
        %2133 = vmatprep.subr.bf16.mxu0 0
        %2134 = vmatpush1.bf16.msra.mxu0 0
        %2135 = vmatprep.subr.bf16.mxu0 0
        %2136 = vmatpush1.bf16.msra.mxu0 0
        %2137 = vmatprep.subr.bf16.mxu0 0
        %2138 = vmatpush1.bf16.msra.mxu0 0
        %2139 = vmatprep.subr.bf16.mxu0 0
        %2140 = vmatpush1.bf16.msra.mxu0 0
        %2141 = vmatprep.subr.bf16.mxu0 0
        %2142 = vmatpush1.bf16.msra.mxu0 0
        %2143 = vmatprep.subr.bf16.mxu0 0
        %2144 = vmatpush1.bf16.msra.mxu0 0
        %2145 = vmatprep.subr.bf16.mxu0 0
        %2146 = vmatpush1.bf16.msra.mxu0 0
        %2147 = vmatprep.subr.bf16.mxu0 0
        %2148 = vmatpush1.bf16.msra.mxu0 0
        %2149 = vmatprep.subr.bf16.mxu0 0
        %2150 = vmatpush1.bf16.msra.mxu0 0
        %2151 = vmatprep.subr.bf16.mxu0 0
        %2152 = vmatpush1.bf16.msra.mxu0 0
        %2153 = vmatprep.subr.bf16.mxu0 0
        %2154 = vmatpush1.bf16.msra.mxu0 0
        %2155 = vmatprep.subr.bf16.mxu0 0
        %2156 = vmatpush1.bf16.msra.mxu0 0
        %2157 = vmatprep.mubr.bf16.mxu0 0
        %2158 = vmatmul.mubr.bf16.gmra.mrb[0].mxu0 %v2111
        %v2159 = vpop.f32.mrb[0].mxu0
        %v2160 = vadd.f32 0.0, %v2159
        %v2161 = vpop.f32.mrb[0].mxu0
        %v2162 = vpop.f32.mrb[0].mxu0
        %v2163 = vadd.f32 0.0, %v2162
        %v2164 = vpop.f32.mrb[0].mxu0
        %2165 = vmatprep.mubr.bf16.mxu0 0
        %2166 = vmatmul.mubr.bf16.gmra.mrb[0].mxu0 %v2114
        %v2167 = vpop.f32.mrb[0].mxu0
        %v2168 = vadd.f32 0.0, %v2167
        %v2169 = vpop.f32.mrb[0].mxu0
        %v2170 = vpop.f32.mrb[0].mxu0
        %v2171 = vadd.f32 0.0, %v2170
        %v2172 = vpop.f32.mrb[0].mxu0
        %2173 = vmatprep.mubr.bf16.mxu0 0
        %2174 = vmatmul.mubr.bf16.gmra.mrb[0].mxu0 %v2117
        %v2175 = vpop.f32.mrb[0].mxu0
        %v2176 = vadd.f32 0.0, %v2175
        %v2177 = vpop.f32.mrb[0].mxu0
        %v2178 = vpop.f32.mrb[0].mxu0
        %v2179 = vadd.f32 0.0, %v2178
        %v2180 = vpop.f32.mrb[0].mxu0
        %2181 = vmatprep.mubr.bf16.mxu0 0
        %2182 = vmatmul.mubr.bf16.gmra.mrb[0].mxu0 %v2120
        %v2183 = vpop.f32.mrb[0].mxu0
        %v2184 = vadd.f32 0.0, %v2183
        %v2185 = vpop.f32.mrb[0].mxu0
        %v2186 = vpop.f32.mrb[0].mxu0
        %v2187 = vadd.f32 0.0, %v2186
        %v2188 = vpop.f32.mrb[0].mxu0
        %2189 = vdwg.mxu0
        %v2198 = vunpack.c.l.b16 %v2062
        %v2199 = vunpack.c.l.b16 %v2063
        %v2200 = vunpack.c.l.b16 %v2064
        %v2201 = vunpack.c.l.b16 %v2065
        %v2202 = vunpack.c.l.b16 %v2066
        %v2203 = vunpack.c.l.b16 %v2067
        %v2204 = vunpack.c.l.b16 %v2068
        %v2205 = vunpack.c.l.b16 %v2069
        %v2206 = vpack.c.b16 %v2199, %v2198
        %v2207 = vpack.c.b16 %v2201, %v2200
        %v2208 = vpack.c.b16 %v2203, %v2202
        %v2209 = vpack.c.b16 %v2205, %v2204
        %v2211 = vsel %vm387, %v2206, 0
        %v2214 = vsel %vm387, %v2207, 0
        %v2217 = vsel %vm387, %v2208, 0
        %v2220 = vsel %vm387, %v2209, 0
        %v2223 = vsel %vm482, %v2071, 0
        %2225 = vmatprep.subr.bf16.mxu0 0
        %2226 = vmatpush1.bf16.msra.mxu0 %v2223
        %2227 = vmatprep.subr.bf16.mxu0 0
        %2228 = vmatpush1.bf16.msra.mxu0 0
        %2229 = vmatprep.subr.bf16.mxu0 0
        %2230 = vmatpush1.bf16.msra.mxu0 0
        %2231 = vmatprep.subr.bf16.mxu0 0
        %2232 = vmatpush1.bf16.msra.mxu0 0
        %2233 = vmatprep.subr.bf16.mxu0 0
        %2234 = vmatpush1.bf16.msra.mxu0 0
        %2235 = vmatprep.subr.bf16.mxu0 0
        %2236 = vmatpush1.bf16.msra.mxu0 0
        %2237 = vmatprep.subr.bf16.mxu0 0
        %2238 = vmatpush1.bf16.msra.mxu0 0
        %2239 = vmatprep.subr.bf16.mxu0 0
        %2240 = vmatpush1.bf16.msra.mxu0 0
        %2241 = vmatprep.subr.bf16.mxu0 0
        %2242 = vmatpush1.bf16.msra.mxu0 0
        %2243 = vmatprep.subr.bf16.mxu0 0
        %2244 = vmatpush1.bf16.msra.mxu0 0
        %2245 = vmatprep.subr.bf16.mxu0 0
        %2246 = vmatpush1.bf16.msra.mxu0 0
        %2247 = vmatprep.subr.bf16.mxu0 0
        %2248 = vmatpush1.bf16.msra.mxu0 0
        %2249 = vmatprep.subr.bf16.mxu0 0
        %2250 = vmatpush1.bf16.msra.mxu0 0
        %2251 = vmatprep.subr.bf16.mxu0 0
        %2252 = vmatpush1.bf16.msra.mxu0 0
        %2253 = vmatprep.subr.bf16.mxu0 0
        %2254 = vmatpush1.bf16.msra.mxu0 0
        %2255 = vmatprep.subr.bf16.mxu0 0
        %2256 = vmatpush1.bf16.msra.mxu0 0
        %2257 = vmatprep.mubr.bf16.mxu0 0
        %2258 = vmatmul.mubr.bf16.gmra.mrb[0].mxu0 %v2211
        %v2259 = vpop.f32.mrb[0].mxu0
        %v2260 = vadd.f32 %v2160, %v2259
        %v2261 = vpop.f32.mrb[0].mxu0
        %v2262 = vpop.f32.mrb[0].mxu0
        %v2263 = vadd.f32 %v2163, %v2262
        %v2264 = vpop.f32.mrb[0].mxu0
        %2265 = vmatprep.mubr.bf16.mxu0 0
        %2266 = vmatmul.mubr.bf16.gmra.mrb[0].mxu0 %v2214
        %v2267 = vpop.f32.mrb[0].mxu0
        %v2268 = vadd.f32 %v2168, %v2267
        %v2269 = vpop.f32.mrb[0].mxu0
        %v2270 = vpop.f32.mrb[0].mxu0
        %v2271 = vadd.f32 %v2171, %v2270
        %v2272 = vpop.f32.mrb[0].mxu0
        %2273 = vmatprep.mubr.bf16.mxu0 0
        %2274 = vmatmul.mubr.bf16.gmra.mrb[0].mxu0 %v2217
        %v2275 = vpop.f32.mrb[0].mxu0
        %v2276 = vadd.f32 %v2176, %v2275
        %v2277 = vpop.f32.mrb[0].mxu0
        %v2278 = vpop.f32.mrb[0].mxu0
        %v2279 = vadd.f32 %v2179, %v2278
        %v2280 = vpop.f32.mrb[0].mxu0
        %2281 = vmatprep.mubr.bf16.mxu0 0
        %2282 = vmatmul.mubr.bf16.gmra.mrb[0].mxu0 %v2220
        %v2283 = vpop.f32.mrb[0].mxu0
        %v2284 = vadd.f32 %v2184, %v2283
        %v2285 = vpop.f32.mrb[0].mxu0
        %v2286 = vpop.f32.mrb[0].mxu0
        %v2287 = vadd.f32 %v2187, %v2286
        %v2288 = vpop.f32.mrb[0].mxu0
        %2289 = vdwg.mxu0
        %v2290 = vld [vmem:[%s1754 + $0x1] sm:$0xff]
        %v2291 = vld [vmem:[%s1754 + $0x11] sm:$0xff]
        %v2292 = vld [vmem:[%s1754 + $0x21] sm:$0xff]
        %v2293 = vld [vmem:[%s1754 + $0x31] sm:$0xff]
        %v2294 = vld [vmem:[%s1754 + $0x41] sm:$0xff]
        %v2295 = vld [vmem:[%s1754 + $0x51] sm:$0xff]
        %v2296 = vld [vmem:[%s1754 + $0x61] sm:$0xff]
        %v2297 = vld [vmem:[%s1754 + $0x71] sm:$0xff]
        %v2298 = vpack.c.bf16 %v2290, %v2290
        %v2299 = vpack.c.bf16 %v2291, %v2291
        %v2300 = vpack.c.bf16 %v2292, %v2292
        %v2301 = vpack.c.bf16 %v2293, %v2293
        %v2302 = vpack.c.bf16 %v2294, %v2294
        %v2303 = vpack.c.bf16 %v2295, %v2295
        %v2304 = vpack.c.bf16 %v2296, %v2296
        %v2305 = vpack.c.bf16 %v2297, %v2297
        %s2306 = scalar_lea.vmem [#allocation8], 8
        %v2307 = vld [vmem:[%s2306] sm:$0xf]
        %v2316 = vunpack.c.l.b16 %v2298
        %v2317 = vunpack.c.l.b16 %v2299
        %v2318 = vunpack.c.l.b16 %v2300
        %v2319 = vunpack.c.l.b16 %v2301
        %v2320 = vunpack.c.l.b16 %v2302
        %v2321 = vunpack.c.l.b16 %v2303
        %v2322 = vunpack.c.l.b16 %v2304
        %v2323 = vunpack.c.l.b16 %v2305
        %v2324 = vpack.c.b16 %v2317, %v2316
        %v2325 = vpack.c.b16 %v2319, %v2318
        %v2326 = vpack.c.b16 %v2321, %v2320
        %v2327 = vpack.c.b16 %v2323, %v2322
        %v2329 = vsel %vm387, %v2324, 0
        %v2332 = vsel %vm387, %v2325, 0
        %v2335 = vsel %vm387, %v2326, 0
        %v2338 = vsel %vm387, %v2327, 0
        %v2341 = vsel %vm482, %v2307, 0
        %2343 = vmatprep.subr.bf16.mxu0 0
        %2344 = vmatpush1.bf16.msra.mxu0 %v2341
        %2345 = vmatprep.subr.bf16.mxu0 0
        %2346 = vmatpush1.bf16.msra.mxu0 0
        %2347 = vmatprep.subr.bf16.mxu0 0
        %2348 = vmatpush1.bf16.msra.mxu0 0
        %2349 = vmatprep.subr.bf16.mxu0 0
        %2350 = vmatpush1.bf16.msra.mxu0 0
        %2351 = vmatprep.subr.bf16.mxu0 0
        %2352 = vmatpush1.bf16.msra.mxu0 0
        %2353 = vmatprep.subr.bf16.mxu0 0
        %2354 = vmatpush1.bf16.msra.mxu0 0
        %2355 = vmatprep.subr.bf16.mxu0 0
        %2356 = vmatpush1.bf16.msra.mxu0 0
        %2357 = vmatprep.subr.bf16.mxu0 0
        %2358 = vmatpush1.bf16.msra.mxu0 0
        %2359 = vmatprep.subr.bf16.mxu0 0
        %2360 = vmatpush1.bf16.msra.mxu0 0
        %2361 = vmatprep.subr.bf16.mxu0 0
        %2362 = vmatpush1.bf16.msra.mxu0 0
        %2363 = vmatprep.subr.bf16.mxu0 0
        %2364 = vmatpush1.bf16.msra.mxu0 0
        %2365 = vmatprep.subr.bf16.mxu0 0
        %2366 = vmatpush1.bf16.msra.mxu0 0
        %2367 = vmatprep.subr.bf16.mxu0 0
        %2368 = vmatpush1.bf16.msra.mxu0 0
        %2369 = vmatprep.subr.bf16.mxu0 0
        %2370 = vmatpush1.bf16.msra.mxu0 0
        %2371 = vmatprep.subr.bf16.mxu0 0
        %2372 = vmatpush1.bf16.msra.mxu0 0
        %2373 = vmatprep.subr.bf16.mxu0 0
        %2374 = vmatpush1.bf16.msra.mxu0 0
        %2375 = vmatprep.mubr.bf16.mxu0 0
        %2376 = vmatmul.mubr.bf16.gmra.mrb[0].mxu0 %v2329
        %v2377 = vpop.f32.mrb[0].mxu0
        %v2378 = vadd.f32 0.0, %v2377
        %v2379 = vpop.f32.mrb[0].mxu0
        %v2380 = vpop.f32.mrb[0].mxu0
        %v2381 = vadd.f32 0.0, %v2380
        %v2382 = vpop.f32.mrb[0].mxu0
        %2383 = vmatprep.mubr.bf16.mxu0 0
        %2384 = vmatmul.mubr.bf16.gmra.mrb[0].mxu0 %v2332
        %v2385 = vpop.f32.mrb[0].mxu0
        %v2386 = vadd.f32 0.0, %v2385
        %v2387 = vpop.f32.mrb[0].mxu0
        %v2388 = vpop.f32.mrb[0].mxu0
        %v2389 = vadd.f32 0.0, %v2388
        %v2390 = vpop.f32.mrb[0].mxu0
        %2391 = vmatprep.mubr.bf16.mxu0 0
        %2392 = vmatmul.mubr.bf16.gmra.mrb[0].mxu0 %v2335
        %v2393 = vpop.f32.mrb[0].mxu0
        %v2394 = vadd.f32 0.0, %v2393
        %v2395 = vpop.f32.mrb[0].mxu0
        %v2396 = vpop.f32.mrb[0].mxu0
        %v2397 = vadd.f32 0.0, %v2396
        %v2398 = vpop.f32.mrb[0].mxu0
        %2399 = vmatprep.mubr.bf16.mxu0 0
        %2400 = vmatmul.mubr.bf16.gmra.mrb[0].mxu0 %v2338
        %v2401 = vpop.f32.mrb[0].mxu0
        %v2402 = vadd.f32 0.0, %v2401
        %v2403 = vpop.f32.mrb[0].mxu0
        %v2404 = vpop.f32.mrb[0].mxu0
        %v2405 = vadd.f32 0.0, %v2404
        %v2406 = vpop.f32.mrb[0].mxu0
        %2407 = vdwg.mxu0
        %v2408 = vadd.f32 %v2260, %v2378
        %v2409 = vadd.f32 %v2263, %v2381
        %v2410 = vadd.f32 %v2268, %v2386
        %v2411 = vadd.f32 %v2271, %v2389
        %v2412 = vadd.f32 %v2276, %v2394
        %v2413 = vadd.f32 %v2279, %v2397
        %v2414 = vadd.f32 %v2284, %v2402
        %v2415 = vadd.f32 %v2287, %v2405
        %v2416 = vld [vmem:[%s1754 + $0x2] sm:$0xff]
        %v2417 = vld [vmem:[%s1754 + $0x12] sm:$0xff]
        %v2418 = vld [vmem:[%s1754 + $0x22] sm:$0xff]
        %v2419 = vld [vmem:[%s1754 + $0x32] sm:$0xff]
        %v2420 = vld [vmem:[%s1754 + $0x42] sm:$0xff]
        %v2421 = vld [vmem:[%s1754 + $0x52] sm:$0xff]
        %v2422 = vld [vmem:[%s1754 + $0x62] sm:$0xff]
        %v2423 = vld [vmem:[%s1754 + $0x72] sm:$0xff]
        %v2424 = vpack.c.bf16 %v2416, %v2416
        %v2425 = vpack.c.bf16 %v2417, %v2417
        %v2426 = vpack.c.bf16 %v2418, %v2418
        %v2427 = vpack.c.bf16 %v2419, %v2419
        %v2428 = vpack.c.bf16 %v2420, %v2420
        %v2429 = vpack.c.bf16 %v2421, %v2421
        %v2430 = vpack.c.bf16 %v2422, %v2422
        %v2431 = vpack.c.bf16 %v2423, %v2423
        %v2432 = vld [vmem:[#allocation8] sm:$0xf]
        %v2441 = vunpack.c.l.b16 %v2424
        %v2442 = vunpack.c.l.b16 %v2425
        %v2443 = vunpack.c.l.b16 %v2426
        %v2444 = vunpack.c.l.b16 %v2427
        %v2445 = vunpack.c.l.b16 %v2428
        %v2446 = vunpack.c.l.b16 %v2429
        %v2447 = vunpack.c.l.b16 %v2430
        %v2448 = vunpack.c.l.b16 %v2431
        %v2449 = vpack.c.b16 %v2442, %v2441
        %v2450 = vpack.c.b16 %v2444, %v2443
        %v2451 = vpack.c.b16 %v2446, %v2445
        %v2452 = vpack.c.b16 %v2448, %v2447
        %v2454 = vsel %vm387, %v2449, 0
        %v2457 = vsel %vm387, %v2450, 0
        %v2460 = vsel %vm387, %v2451, 0
        %v2463 = vsel %vm387, %v2452, 0
        %v2466 = vsel %vm482, %v2432, 0
        %2468 = vmatprep.subr.bf16.mxu0 0
        %2469 = vmatpush1.bf16.msra.mxu0 %v2466
        %2470 = vmatprep.subr.bf16.mxu0 0
        %2471 = vmatpush1.bf16.msra.mxu0 0
        %2472 = vmatprep.subr.bf16.mxu0 0
        %2473 = vmatpush1.bf16.msra.mxu0 0
        %2474 = vmatprep.subr.bf16.mxu0 0
        %2475 = vmatpush1.bf16.msra.mxu0 0
        %2476 = vmatprep.subr.bf16.mxu0 0
        %2477 = vmatpush1.bf16.msra.mxu0 0
        %2478 = vmatprep.subr.bf16.mxu0 0
        %2479 = vmatpush1.bf16.msra.mxu0 0
        %2480 = vmatprep.subr.bf16.mxu0 0
        %2481 = vmatpush1.bf16.msra.mxu0 0
        %2482 = vmatprep.subr.bf16.mxu0 0
        %2483 = vmatpush1.bf16.msra.mxu0 0
        %2484 = vmatprep.subr.bf16.mxu0 0
        %2485 = vmatpush1.bf16.msra.mxu0 0
        %2486 = vmatprep.subr.bf16.mxu0 0
        %2487 = vmatpush1.bf16.msra.mxu0 0
        %2488 = vmatprep.subr.bf16.mxu0 0
        %2489 = vmatpush1.bf16.msra.mxu0 0
        %2490 = vmatprep.subr.bf16.mxu0 0
        %2491 = vmatpush1.bf16.msra.mxu0 0
        %2492 = vmatprep.subr.bf16.mxu0 0
        %2493 = vmatpush1.bf16.msra.mxu0 0
        %2494 = vmatprep.subr.bf16.mxu0 0
        %2495 = vmatpush1.bf16.msra.mxu0 0
        %2496 = vmatprep.subr.bf16.mxu0 0
        %2497 = vmatpush1.bf16.msra.mxu0 0
        %2498 = vmatprep.subr.bf16.mxu0 0
        %2499 = vmatpush1.bf16.msra.mxu0 0
        %2500 = vmatprep.mubr.bf16.mxu0 0
        %2501 = vmatmul.mubr.bf16.gmra.mrb[0].mxu0 %v2454
        %v2502 = vpop.f32.mrb[0].mxu0
        %v2503 = vadd.f32 0.0, %v2502
        %v2504 = vpop.f32.mrb[0].mxu0
        %v2505 = vpop.f32.mrb[0].mxu0
        %v2506 = vadd.f32 0.0, %v2505
        %v2507 = vpop.f32.mrb[0].mxu0
        %2508 = vmatprep.mubr.bf16.mxu0 0
        %2509 = vmatmul.mubr.bf16.gmra.mrb[0].mxu0 %v2457
        %v2510 = vpop.f32.mrb[0].mxu0
        %v2511 = vadd.f32 0.0, %v2510
        %v2512 = vpop.f32.mrb[0].mxu0
        %v2513 = vpop.f32.mrb[0].mxu0
        %v2514 = vadd.f32 0.0, %v2513
        %v2515 = vpop.f32.mrb[0].mxu0
        %2516 = vmatprep.mubr.bf16.mxu0 0
        %2517 = vmatmul.mubr.bf16.gmra.mrb[0].mxu0 %v2460
        %v2518 = vpop.f32.mrb[0].mxu0
        %v2519 = vadd.f32 0.0, %v2518
        %v2520 = vpop.f32.mrb[0].mxu0
        %v2521 = vpop.f32.mrb[0].mxu0
        %v2522 = vadd.f32 0.0, %v2521
        %v2523 = vpop.f32.mrb[0].mxu0
        %2524 = vmatprep.mubr.bf16.mxu0 0
        %2525 = vmatmul.mubr.bf16.gmra.mrb[0].mxu0 %v2463
        %v2526 = vpop.f32.mrb[0].mxu0
        %v2527 = vadd.f32 0.0, %v2526
        %v2528 = vpop.f32.mrb[0].mxu0
        %v2529 = vpop.f32.mrb[0].mxu0
        %v2530 = vadd.f32 0.0, %v2529
        %v2531 = vpop.f32.mrb[0].mxu0
        %2532 = vdwg.mxu0
        %v2533 = vadd.f32 %v2408, %v2503
        %v2534 = vadd.f32 %v2409, %v2506
        %v2535 = vadd.f32 %v2410, %v2511
        %v2536 = vadd.f32 %v2411, %v2514
        %v2537 = vadd.f32 %v2412, %v2519
        %v2538 = vadd.f32 %v2413, %v2522
        %v2539 = vadd.f32 %v2414, %v2527
        %v2540 = vadd.f32 %v2415, %v2530
        %v2541 = vld [vmem:[#allocation9] sm:$0x1]
        %v2543 = vlaneseq
        %v2544 = vshrl.u32 %v2543, 7
        %v2545 = vsub.s32 0, %v2544
        %v2546 = vrot.slane %v2541, %v2545
        %v2548 = vmul.f32 %v2533, %v2546
        %v2549 = vmul.f32 %v2534, %v2546
        %v2550 = vmul.f32 %v2535, %v2546
        %v2551 = vmul.f32 %v2536, %v2546
        %v2552 = vmul.f32 %v2537, %v2546
        %v2553 = vmul.f32 %v2538, %v2546
        %v2554 = vmul.f32 %v2539, %v2546
        %v2555 = vmul.f32 %v2540, %v2546
        %v2556 = vld [vmem:[#allocation11] sm:$0x1]
        %v2558 = vlaneseq
        %v2559 = vshrl.u32 %v2558, 7
        %v2560 = vsub.s32 0, %v2559
        %v2561 = vrot.slane %v2556, %v2560
        %v2563 = vadd.f32 %v2548, %v2561
        %v2564 = vadd.f32 %v2549, %v2561
        %v2565 = vadd.f32 %v2550, %v2561
        %v2566 = vadd.f32 %v2551, %v2561
        %v2567 = vadd.f32 %v2552, %v2561
        %v2568 = vadd.f32 %v2553, %v2561
        %v2569 = vadd.f32 %v2554, %v2561
        %v2570 = vadd.f32 %v2555, %v2561
        %v2571 = vmax.f32 %v2563, 0.0
        %v2572 = vmax.f32 %v2564, 0.0
        %v2573 = vmax.f32 %v2565, 0.0
        %v2574 = vmax.f32 %v2566, 0.0
        %v2575 = vmax.f32 %v2567, 0.0
        %v2576 = vmax.f32 %v2568, 0.0
        %v2577 = vmax.f32 %v2569, 0.0
        %v2578 = vmax.f32 %v2570, 0.0
        %2587 = vrot.lane.b32.xlu0 %v2571, 16
        %v2588 = vpop.permute.xlu0 %2587
        %2589 = vrot.lane.b32.xlu0 %v2572, 16
        %v2590 = vpop.permute.xlu0 %2589
        %2591 = vrot.lane.b32.xlu0 %v2573, 16
        %v2592 = vpop.permute.xlu0 %2591
        %2593 = vrot.lane.b32.xlu0 %v2574, 16
        %v2594 = vpop.permute.xlu0 %2593
        %2595 = vrot.lane.b32.xlu0 %v2575, 16
        %v2596 = vpop.permute.xlu0 %2595
        %2597 = vrot.lane.b32.xlu0 %v2576, 16
        %v2598 = vpop.permute.xlu0 %2597
        %2599 = vrot.lane.b32.xlu0 %v2577, 16
        %v2600 = vpop.permute.xlu0 %2599
        %2601 = vrot.lane.b32.xlu0 %v2578, 16
        %v2602 = vpop.permute.xlu0 %2601
        %2611 = vst.msk [vmem:[%s2045] sm:$0xff] %vm1509, %v2588
        %2612 = vst.msk [vmem:[%s2045 + $0x10] sm:$0xff] %vm1509, %v2590
        %2613 = vst.msk [vmem:[%s2045 + $0x20] sm:$0xff] %vm1509, %v2592
        %2614 = vst.msk [vmem:[%s2045 + $0x30] sm:$0xff] %vm1509, %v2594
        %2615 = vst.msk [vmem:[%s2045 + $0x40] sm:$0xff] %vm1509, %v2596
        %2616 = vst.msk [vmem:[%s2045 + $0x50] sm:$0xff] %vm1509, %v2598
        %2617 = vst.msk [vmem:[%s2045 + $0x60] sm:$0xff] %vm1509, %v2600
        %2618 = vst.msk [vmem:[%s2045 + $0x70] sm:$0xff] %vm1509, %v2602
        %s2619 = sand.u32 %s171, 1
        %s2620 = scalar_lea.sflag [#allocation5], %s2619
        %s2621 = sand.u32 %s171, 1
        %s2622 = smul.addr %s2621, 128
        %s2623 = scalar_lea.vmem [#allocation12], %s2622
        // Predicated region
        $region61: #{tpu_custom_call.1} parent=39 // pred_check
          %p2624 = pneg %p181
        $region62: #{tpu_custom_call.1} parent=39 // pred_check_branch
          %2626 = sbr.rel (%p2624) target = $region64
        $region63: #{tpu_custom_call.1} parent=39 // pred_region
          %s2627 = smul.u32 8, %s31
          %s2629 = ssub.s32 2048, 2048
          %2630 = vsyncadd %s2620, %s2629
          %s2631 = smul.addr %s2627, 2
          %s2632 = smul.addr %s30, 16
          %s2633 = sadd.s32 %s2631, %s2632
          %s2634 = smul.addr %s2633, 128
          %s2635 = scalar_lea.hbm %s5, %s2634
          %s2636 = sshll.u32 %s2623, 4
          %s2637 = int_to_ptr.vmem [resolvable:$true] %s2636
          %2642 = dma.vmem_to_hbm [thread:$0]  %s2637, 2048, %s2635, %s2620, 128, 128, 8
        $region64: #{tpu_custom_call.1} parent=39 // pred_fallthru
          _
      $region40: #{tpu_custom_call.1} parent=5 // pred_fallthru
        _
      %p2643 = scmp.le.s32.totalorder 2, %s21
      // Predicated region
      $region65: #{tpu_custom_call.1} parent=5 // pred_check
        %p2644 = pneg %p2643
      $region66: #{tpu_custom_call.1} parent=5 // pred_check_branch
        %2646 = sbr.rel (%p2644) target = $region68
      $region67: #{tpu_custom_call.1} parent=5 // pred_region
        %s2647 = ssub.s32 %s21, 2
        // Predicated region
        $region69: #{tpu_custom_call.1} parent=67 // pred_check
          %p2648 = pneg %p187
        $region70: #{tpu_custom_call.1} parent=67 // pred_check_branch
          %2650 = sbr.rel (%p2648) target = $region72
        $region71: #{tpu_custom_call.1} parent=67 // pred_region
          %s2651 = sand.u32 %s172, 1
          %s2652 = scalar_lea.sflag [#allocation5], %s2651
          %s2653 = sand.u32 %s172, 1
          %s2654 = smul.addr %s2653, 128
          %s2655 = scalar_lea.vmem [#allocation12], %s2654
          %2656 = dma.done %s2652, 2048
        $region72: #{tpu_custom_call.1} parent=67 // pred_fallthru
          _
      $region68: #{tpu_custom_call.1} parent=5 // pred_fallthru
        _
    $region6: #{tpu_custom_call.1} parent=1 // loop_footer
      %s25 = sadd.s32 1, %s21
    $region7: #{tpu_custom_call.1} parent=1 // loop_footer_branch
      %20 = sbr.rel target = $region3
    $region8: #{tpu_custom_call.1} parent=1 // loop_exit
      _
    %2657 = vsyncpa [#allocation4], 1
    %s2658 = scalar_lea.sflag [#allocation4], 1
    %2659 = vsyncpa %s2658, 1
    %2660 = vsyncpa [#allocation7], 1
    %s2661 = scalar_lea.sflag [#allocation7], 1
    %2662 = vsyncpa %s2661, 1
    %2663 = vsyncpa [#allocation10], 1
    %2664 = vsyncpa [#allocation5], 1
    %s2665 = scalar_lea.sflag [#allocation5], 1
    %2666 = vsyncpa %s2665, 1

</llo_original>
